<compile_context>
chip_gen: v7x
topology: tpu7x:2x2x1
jax: 0.10.0
libtpu: 0.0.40
codegen_flags: <defaults>
</compile_context>

<pallas_src>
import jax
import jax.numpy as jnp
import numpy as np
from jax import lax
from jax.experimental import pallas as pl
from jax.experimental.pallas import tpu as pltpu


def _lure_kernel(d_ref, x0_ref, Wx_ref, Ww_ref, Wd_ref, Wex_ref, Wew_ref,
                 e_ref, xT_ref,
                 uz_ref, ux_ref, ue_ref, xs_ref, ws_ref):
    """Sequential Lur'e recurrence, fully resident in VMEM.

    d_ref : (N, Bp, nu)          time-major input (batch padded to multiple of 8)
    x0_ref: (Bp, nx)             initial state
    Wx_ref: (nx, nz+nx)          [C1^T | A^T]
    Ww_ref: (nz, nx)             B1^T
    Wd_ref: (nu, nz+nx+ny)       [D12^T | B2^T | D22^T]
    Wex_ref: (nx, ny)            C2^T
    Wew_ref: (nz, ny)            D21^T
    e_ref : (N, Bp, ny)          time-major output
    xT_ref: (Bp, nx)             final state
    """
    N, Bp, nu = d_ref.shape
    nx = x0_ref.shape[1]
    nz = Ww_ref.shape[0]
    ny = Wew_ref.shape[1]

    # ---- Hoisted: every d-dependent term for every timestep in ONE batched matmul ----
    dd = d_ref[...].reshape(N * Bp, nu)
    U = jnp.dot(dd, Wd_ref[...], preferred_element_type=jnp.float32)  # (N*Bp, nz+nx+ny)
    uz_ref[...] = U[:, :nz].reshape(N, Bp, nz)                        # D12 d_k
    ux_ref[...] = U[:, nz:nz + nx].reshape(N, Bp, nx)                 # B2  d_k
    ue_ref[...] = U[:, nz + nx:nz + nx + ny].reshape(N, Bp, ny)       # D22 d_k

    # ---- Serial recurrence: 2 MXU matmuls per step on the critical path ----
    def step(k, x):
        xs_ref[k] = x                                                 # stash x_k for e
        xa = jnp.dot(x, Wx_ref[...], preferred_element_type=jnp.float32)  # (Bp, nz+nx)
        w = jnp.tanh(xa[:, :nz] + uz_ref[k])                          # w_k (EUP)
        ws_ref[k] = w                                                 # stash w_k for e
        x_next = (xa[:, nz:nz + nx]
                  + jnp.dot(w, Ww_ref[...], preferred_element_type=jnp.float32)
                  + ux_ref[k])
        return x_next

    x_final = lax.fori_loop(0, N, step, x0_ref[...], unroll=True)
    xT_ref[...] = x_final

    # ---- Outputs e_k: off the critical path, one batched matmul + one store ----
    Xs = xs_ref[...].reshape(N * Bp, nx)
    Ws = ws_ref[...].reshape(N * Bp, nz)
    E = (jnp.dot(Xs, Wex_ref[...], preferred_element_type=jnp.float32)
         + jnp.dot(Ws, Wew_ref[...], preferred_element_type=jnp.float32)
         + ue_ref[...].reshape(N * Bp, ny))
    e_ref[...] = E.reshape(N, Bp, ny)


def constrained_module_forward(d, params, x0=None):
    """Mirrors ConstrainedModule.forward(d, x0)."""
    B, N, nu = d.shape
    nx = params["A"].shape[0]
    nz = params["C1"].shape[0]
    ny = params["C2"].shape[0]

    # x0 convention from the PyTorch spec: x0 is a tuple (x,) or (x, _); also accept a
    # plain (B, nx) array for robustness.
    if x0 is None:
        x0_arr = jnp.zeros((B, nx), jnp.float32)
    elif isinstance(x0, (tuple, list)):
        x0_arr = jnp.asarray(x0[0], jnp.float32)
    else:
        x0_arr = jnp.asarray(x0, jnp.float32)
    assert x0_arr.shape == (B, nx), f"x0 must have shape {(B, nx)}, got {x0_arr.shape}"

    # Pad batch to a multiple of 8 (f32 sublane count) so state tiles fill whole vregs.
    Bp = ((B + 7) // 8) * 8
    d_t = jnp.transpose(d, (1, 0, 2)).astype(jnp.float32)   # (N, B, nu) time-major
    if Bp != B:
        d_t = jnp.pad(d_t, ((0, 0), (0, Bp - B), (0, 0)))
        x0_arr = jnp.pad(x0_arr, ((0, Bp - B), (0, 0)))

    # Pre-transposed / pre-concatenated weights (row-vector convention: x @ W^T).
    f32 = jnp.float32
    Wx = jnp.concatenate([params["C1"].T, params["A"].T], axis=1).astype(f32)     # (nx, nz+nx)
    Ww = params["B1"].T.astype(f32)                                               # (nz, nx)
    Wd = jnp.concatenate([params["D12"].T, params["B2"].T, params["D22"].T],
                         axis=1).astype(f32)                                      # (nu, nz+nx+ny)
    Wex = params["C2"].T.astype(f32)                                              # (nx, ny)
    Wew = params["D21"].T.astype(f32)                                             # (nz, ny)

    e_t, x_T = pl.pallas_call(
        _lure_kernel,
        out_shape=(
            jax.ShapeDtypeStruct((N, Bp, ny), jnp.float32),
            jax.ShapeDtypeStruct((Bp, nx), jnp.float32),
        ),
        # No grid: small shapes sit entirely in VMEM; the recurrence is a sequential
        # in-kernel loop, which is the hot path here.
        in_specs=[pl.BlockSpec(memory_space=pltpu.MemorySpace.VMEM)] * 7,
        out_specs=(pl.BlockSpec(memory_space=pltpu.MemorySpace.VMEM),
                   pl.BlockSpec(memory_space=pltpu.MemorySpace.VMEM)),
        scratch_shapes=[
            pltpu.VMEM((N, Bp, nz), jnp.float32),   # uz: D12 d_k
            pltpu.VMEM((N, Bp, nx), jnp.float32),   # ux: B2  d_k
            pltpu.VMEM((N, Bp, ny), jnp.float32),   # ue: D22 d_k
            pltpu.VMEM((N, Bp, nx), jnp.float32),   # xs: stashed states x_k
            pltpu.VMEM((N, Bp, nz), jnp.float32),   # ws: stashed w_k
        ],
    )(d_t, x0_arr, Wx, Ww, Wd, Wex, Wew)

    es_hat = jnp.transpose(e_t[:, :B, :], (1, 0, 2)).reshape(B, N, ny)
    return es_hat, (x_T[:B].reshape(B, nx),)


def _reference_forward(d, params, x0=None):
    """Pure-JAX reference (lax.scan) for correctness checking."""
    B, N, nu = d.shape
    nx = params["A"].shape[0]
    if x0 is None:
        x0_arr = jnp.zeros((B, nx), jnp.float32)
    elif isinstance(x0, (tuple, list)):
        x0_arr = jnp.asarray(x0[0], jnp.float32)
    else:
        x0_arr = jnp.asarray(x0, jnp.float32)

    def step(x, d_k):
        z = x @ params["C1"].T + d_k @ params["D12"].T
        w = jnp.tanh(z)
        e = x @ params["C2"].T + w @ params["D21"].T + d_k @ params["D22"].T
        x_next = x @ params["A"].T + w @ params["B1"].T + d_k @ params["B2"].T
        return x_next, e

    x_T, es = lax.scan(step, x0_arr, jnp.transpose(d, (1, 0, 2)))
    return jnp.transpose(es, (1, 0, 2)), (x_T,)


def init_params(nx, nz, nu, ny, init_std=1.0, seed=0):
    """Deterministic synthetic parameter init (shapes from the Lur'e structure)."""
    key = jax.random.PRNGKey(seed)
    ks = jax.random.split(key, 8)
    scale = init_std * 0.1  # keep the recurrence stable for the demo
    return {
        "A":   scale * jax.random.normal(ks[0], (nx, nx), jnp.float32),
        "B1":  scale * jax.random.normal(ks[1], (nx, nz), jnp.float32),
        "B2":  scale * jax.random.normal(ks[2], (nx, nu), jnp.float32),
        "C1":  scale * jax.random.normal(ks[3], (nz, nx), jnp.float32),
        "D12": scale * jax.random.normal(ks[4], (nz, nu), jnp.float32),
        "C2":  scale * jax.random.normal(ks[5], (ny, nx), jnp.float32),
        "D21": scale * jax.random.normal(ks[6], (ny, nz), jnp.float32),
        "D22": scale * jax.random.normal(ks[7], (ny, nu), jnp.float32),
        # Multiplier L (multiplier == 'none'): identity, unused in forward().
        "L":   jnp.eye(nz, dtype=jnp.float32),
    }


if __name__ == "__main__":
    # Small shapes consistent with the module's forward: d: (B, N, nu).
    B, N, nu = 2, 8, 4
    nx, nz, ny = 32, 32, 4

    params = init_params(nx, nz, nu, ny, init_std=1.0, seed=0)

    key = jax.random.PRNGKey(0)
    kd, kx = jax.random.split(key)
    d = jax.random.normal(kd, (B, N, nu), jnp.float32)

    # Case 1: default zero initial state.
    es_hat, (x_T,) = constrained_module_forward(d, params, x0=None)
    jax.block_until_ready((es_hat, x_T))
    es_ref, (x_ref,) = _reference_forward(d, params, x0=None)
    np.testing.assert_allclose(np.asarray(es_hat), np.asarray(es_ref), rtol=1e-5, atol=1e-5)
    np.testing.assert_allclose(np.asarray(x_T), np.asarray(x_ref), rtol=1e-5, atol=1e-5)
    assert es_hat.shape == (B, N, ny)
    assert x_T.shape == (B, nx)

    # Case 2: explicit initial state passed as a tuple (PyTorch x0 convention).
    x0_init = (0.5 * jax.random.normal(kx, (B, nx), jnp.float32),)
    es_hat2, (x_T2,) = constrained_module_forward(d, params, x0=x0_init)
    jax.block_until_ready((es_hat2, x_T2))
    es_ref2, (x_ref2,) = _reference_forward(d, params, x0=x0_init)
    np.testing.assert_allclose(np.asarray(es_hat2), np.asarray(es_ref2), rtol=1e-5, atol=1e-5)
    np.testing.assert_allclose(np.asarray(x_T2), np.asarray(x_ref2), rtol=1e-5, atol=1e-5)

    print("KERNEL_OK")
</pallas_src>

<mosaic_0001>
module attributes {stable_mosaic.version = 11 : i64} {
  func.func @_lure_kernel(%arg0: memref<8x8x4xf32, #tpu.memory_space<vmem>>, %arg1: memref<8x32xf32, #tpu.memory_space<vmem>>, %arg2: memref<32x64xf32, #tpu.memory_space<vmem>>, %arg3: memref<32x32xf32, #tpu.memory_space<vmem>>, %arg4: memref<4x68xf32, #tpu.memory_space<vmem>>, %arg5: memref<32x4xf32, #tpu.memory_space<vmem>>, %arg6: memref<32x4xf32, #tpu.memory_space<vmem>>, %arg7: memref<8x8x4xf32, #tpu.memory_space<vmem>>, %arg8: memref<8x32xf32, #tpu.memory_space<vmem>>, %arg9: memref<8x8x32xf32, #tpu.memory_space<vmem>>, %arg10: memref<8x8x32xf32, #tpu.memory_space<vmem>>, %arg11: memref<8x8x4xf32, #tpu.memory_space<vmem>>, %arg12: memref<8x8x32xf32, #tpu.memory_space<vmem>>, %arg13: memref<8x8x32xf32, #tpu.memory_space<vmem>>) attributes {dimension_semantics = [], scalar_prefetch = 0 : i64, scratch_operands = 5 : i64, tpu.core_type = #tpu.core_type<tc>} {
    %c0 = arith.constant 0 : index
    %c0_0 = arith.constant 0 : index
    %c0_1 = arith.constant 0 : index
    %0 = vector.load %arg0[%c0, %c0_0, %c0_1] : memref<8x8x4xf32, #tpu.memory_space<vmem>>, vector<8x8x4xf32>
    %1 = vector.shape_cast %0 : vector<8x8x4xf32> to vector<64x4xf32>
    %c0_2 = arith.constant 0 : index
    %c0_3 = arith.constant 0 : index
    %2 = vector.load %arg4[%c0_2, %c0_3] : memref<4x68xf32, #tpu.memory_space<vmem>>, vector<4x68xf32>
    %cst = arith.constant dense<0.000000e+00> : vector<64x68xf32>
    %3 = tpu.matmul %1, %2, %cst {dimension_numbers = #tpu.dot_dimension_numbers<[1], [0], [0], [1], [0, 0, 1, 1], [], []>} : vector<64x4xf32>, vector<4x68xf32>, vector<64x68xf32> -> vector<64x68xf32>
    %4 = vector.extract_strided_slice %3 {offsets = [0, 0], sizes = [64, 32], strides = [1, 1]} : vector<64x68xf32> to vector<64x32xf32>
    %5 = vector.shape_cast %4 : vector<64x32xf32> to vector<8x8x32xf32>
    %c0_4 = arith.constant 0 : index
    %c0_5 = arith.constant 0 : index
    %c0_6 = arith.constant 0 : index
    %6 = vector.load %arg9[%c0_4, %c0_5, %c0_6] : memref<8x8x32xf32, #tpu.memory_space<vmem>>, vector<8x8x32xf32>
    tpu.vector_store %arg9[%c0_4, %c0_5, %c0_6], %5 {strides = array<i32>} : memref<8x8x32xf32, #tpu.memory_space<vmem>>, vector<8x8x32xf32>,
    %7 = vector.extract_strided_slice %3 {offsets = [0, 32], sizes = [64, 32], strides = [1, 1]} : vector<64x68xf32> to vector<64x32xf32>
    %8 = vector.shape_cast %7 : vector<64x32xf32> to vector<8x8x32xf32>
    %c0_7 = arith.constant 0 : index
    %c0_8 = arith.constant 0 : index
    %c0_9 = arith.constant 0 : index
    %9 = vector.load %arg10[%c0_7, %c0_8, %c0_9] : memref<8x8x32xf32, #tpu.memory_space<vmem>>, vector<8x8x32xf32>
    tpu.vector_store %arg10[%c0_7, %c0_8, %c0_9], %8 {strides = array<i32>} : memref<8x8x32xf32, #tpu.memory_space<vmem>>, vector<8x8x32xf32>,
    %10 = vector.extract_strided_slice %3 {offsets = [0, 64], sizes = [64, 4], strides = [1, 1]} : vector<64x68xf32> to vector<64x4xf32>
    %11 = vector.shape_cast %10 : vector<64x4xf32> to vector<8x8x4xf32>
    %c0_10 = arith.constant 0 : index
    %c0_11 = arith.constant 0 : index
    %c0_12 = arith.constant 0 : index
    %12 = vector.load %arg11[%c0_10, %c0_11, %c0_12] : memref<8x8x4xf32, #tpu.memory_space<vmem>>, vector<8x8x4xf32>
    tpu.vector_store %arg11[%c0_10, %c0_11, %c0_12], %11 {strides = array<i32>} : memref<8x8x4xf32, #tpu.memory_space<vmem>>, vector<8x8x4xf32>,
    %c0_13 = arith.constant 0 : index
    %c0_14 = arith.constant 0 : index
    %13 = vector.load %arg1[%c0_13, %c0_14] : memref<8x32xf32, #tpu.memory_space<vmem>>, vector<8x32xf32>
    %c0_i32 = arith.constant 0 : i32
    %14 = arith.index_cast %c0_i32 : i32 to index
    %c0_15 = arith.constant 0 : index
    %c0_16 = arith.constant 0 : index
    %15 = vector.load %arg12[%14, %c0_15, %c0_16] : memref<8x8x32xf32, #tpu.memory_space<vmem>>, vector<1x8x32xf32>
    %16 = vector.shape_cast %15 : vector<1x8x32xf32> to vector<8x32xf32>
    %17 = vector.shape_cast %13 : vector<8x32xf32> to vector<1x8x32xf32>
    tpu.vector_store %arg12[%14, %c0_15, %c0_16], %17 {strides = array<i32>} : memref<8x8x32xf32, #tpu.memory_space<vmem>>, vector<1x8x32xf32>,
    %c0_17 = arith.constant 0 : index
    %c0_18 = arith.constant 0 : index
    %18 = vector.load %arg2[%c0_17, %c0_18] : memref<32x64xf32, #tpu.memory_space<vmem>>, vector<32x64xf32>
    %cst_19 = arith.constant dense<0.000000e+00> : vector<8x64xf32>
    %19 = tpu.matmul %13, %18, %cst_19 {dimension_numbers = #tpu.dot_dimension_numbers<[1], [0], [0], [1], [0, 0, 1, 1], [], []>} : vector<8x32xf32>, vector<32x64xf32>, vector<8x64xf32> -> vector<8x64xf32>
    %20 = vector.extract_strided_slice %19 {offsets = [0, 0], sizes = [8, 32], strides = [1, 1]} : vector<8x64xf32> to vector<8x32xf32>
    %21 = arith.index_cast %c0_i32 : i32 to index
    %c0_20 = arith.constant 0 : index
    %c0_21 = arith.constant 0 : index
    %22 = vector.load %arg9[%21, %c0_20, %c0_21] : memref<8x8x32xf32, #tpu.memory_space<vmem>>, vector<1x8x32xf32>
    %23 = vector.shape_cast %22 : vector<1x8x32xf32> to vector<8x32xf32>
    %24 = arith.addf %20, %23 : vector<8x32xf32>
    %25 = math.tanh %24 : vector<8x32xf32>
    %26 = arith.index_cast %c0_i32 : i32 to index
    %c0_22 = arith.constant 0 : index
    %c0_23 = arith.constant 0 : index
    %27 = vector.load %arg13[%26, %c0_22, %c0_23] : memref<8x8x32xf32, #tpu.memory_space<vmem>>, vector<1x8x32xf32>
    %28 = vector.shape_cast %27 : vector<1x8x32xf32> to vector<8x32xf32>
    %29 = vector.shape_cast %25 : vector<8x32xf32> to vector<1x8x32xf32>
    tpu.vector_store %arg13[%26, %c0_22, %c0_23], %29 {strides = array<i32>} : memref<8x8x32xf32, #tpu.memory_space<vmem>>, vector<1x8x32xf32>,
    %30 = vector.extract_strided_slice %19 {offsets = [0, 32], sizes = [8, 32], strides = [1, 1]} : vector<8x64xf32> to vector<8x32xf32>
    %c0_24 = arith.constant 0 : index
    %c0_25 = arith.constant 0 : index
    %31 = vector.load %arg3[%c0_24, %c0_25] : memref<32x32xf32, #tpu.memory_space<vmem>>, vector<32x32xf32>
    %cst_26 = arith.constant dense<0.000000e+00> : vector<8x32xf32>
    %32 = tpu.matmul %25, %31, %cst_26 {dimension_numbers = #tpu.dot_dimension_numbers<[1], [0], [0], [1], [0, 0, 1, 1], [], []>} : vector<8x32xf32>, vector<32x32xf32>, vector<8x32xf32> -> vector<8x32xf32>
    %33 = arith.addf %30, %32 : vector<8x32xf32>
    %34 = arith.index_cast %c0_i32 : i32 to index
    %c0_27 = arith.constant 0 : index
    %c0_28 = arith.constant 0 : index
    %35 = vector.load %arg10[%34, %c0_27, %c0_28] : memref<8x8x32xf32, #tpu.memory_space<vmem>>, vector<1x8x32xf32>
    %36 = vector.shape_cast %35 : vector<1x8x32xf32> to vector<8x32xf32>
    %37 = arith.addf %33, %36 : vector<8x32xf32>
    %c1_i32 = arith.constant 1 : i32
    %38 = arith.index_cast %c1_i32 : i32 to index
    %c0_29 = arith.constant 0 : index
    %c0_30 = arith.constant 0 : index
    %39 = vector.load %arg12[%38, %c0_29, %c0_30] : memref<8x8x32xf32, #tpu.memory_space<vmem>>, vector<1x8x32xf32>
    %40 = vector.shape_cast %39 : vector<1x8x32xf32> to vector<8x32xf32>
    %41 = vector.shape_cast %37 : vector<8x32xf32> to vector<1x8x32xf32>
    tpu.vector_store %arg12[%38, %c0_29, %c0_30], %41 {strides = array<i32>} : memref<8x8x32xf32, #tpu.memory_space<vmem>>, vector<1x8x32xf32>,
    %c0_31 = arith.constant 0 : index
    %c0_32 = arith.constant 0 : index
    %42 = vector.load %arg2[%c0_31, %c0_32] : memref<32x64xf32, #tpu.memory_space<vmem>>, vector<32x64xf32>
    %cst_33 = arith.constant dense<0.000000e+00> : vector<8x64xf32>
    %43 = tpu.matmul %37, %42, %cst_33 {dimension_numbers = #tpu.dot_dimension_numbers<[1], [0], [0], [1], [0, 0, 1, 1], [], []>} : vector<8x32xf32>, vector<32x64xf32>, vector<8x64xf32> -> vector<8x64xf32>
    %44 = vector.extract_strided_slice %43 {offsets = [0, 0], sizes = [8, 32], strides = [1, 1]} : vector<8x64xf32> to vector<8x32xf32>
    %45 = arith.index_cast %c1_i32 : i32 to index
    %c0_34 = arith.constant 0 : index
    %c0_35 = arith.constant 0 : index
    %46 = vector.load %arg9[%45, %c0_34, %c0_35] : memref<8x8x32xf32, #tpu.memory_space<vmem>>, vector<1x8x32xf32>
    %47 = vector.shape_cast %46 : vector<1x8x32xf32> to vector<8x32xf32>
    %48 = arith.addf %44, %47 : vector<8x32xf32>
    %49 = math.tanh %48 : vector<8x32xf32>
    %50 = arith.index_cast %c1_i32 : i32 to index
    %c0_36 = arith.constant 0 : index
    %c0_37 = arith.constant 0 : index
    %51 = vector.load %arg13[%50, %c0_36, %c0_37] : memref<8x8x32xf32, #tpu.memory_space<vmem>>, vector<1x8x32xf32>
    %52 = vector.shape_cast %51 : vector<1x8x32xf32> to vector<8x32xf32>
    %53 = vector.shape_cast %49 : vector<8x32xf32> to vector<1x8x32xf32>
    tpu.vector_store %arg13[%50, %c0_36, %c0_37], %53 {strides = array<i32>} : memref<8x8x32xf32, #tpu.memory_space<vmem>>, vector<1x8x32xf32>,
    %54 = vector.extract_strided_slice %43 {offsets = [0, 32], sizes = [8, 32], strides = [1, 1]} : vector<8x64xf32> to vector<8x32xf32>
    %c0_38 = arith.constant 0 : index
    %c0_39 = arith.constant 0 : index
    %55 = vector.load %arg3[%c0_38, %c0_39] : memref<32x32xf32, #tpu.memory_space<vmem>>, vector<32x32xf32>
    %cst_40 = arith.constant dense<0.000000e+00> : vector<8x32xf32>
    %56 = tpu.matmul %49, %55, %cst_40 {dimension_numbers = #tpu.dot_dimension_numbers<[1], [0], [0], [1], [0, 0, 1, 1], [], []>} : vector<8x32xf32>, vector<32x32xf32>, vector<8x32xf32> -> vector<8x32xf32>
    %57 = arith.addf %54, %56 : vector<8x32xf32>
    %58 = arith.index_cast %c1_i32 : i32 to index
    %c0_41 = arith.constant 0 : index
    %c0_42 = arith.constant 0 : index
    %59 = vector.load %arg10[%58, %c0_41, %c0_42] : memref<8x8x32xf32, #tpu.memory_space<vmem>>, vector<1x8x32xf32>
    %60 = vector.shape_cast %59 : vector<1x8x32xf32> to vector<8x32xf32>
    %61 = arith.addf %57, %60 : vector<8x32xf32>
    %c2_i32 = arith.constant 2 : i32
    %62 = arith.index_cast %c2_i32 : i32 to index
    %c0_43 = arith.constant 0 : index
    %c0_44 = arith.constant 0 : index
    %63 = vector.load %arg12[%62, %c0_43, %c0_44] : memref<8x8x32xf32, #tpu.memory_space<vmem>>, vector<1x8x32xf32>
    %64 = vector.shape_cast %63 : vector<1x8x32xf32> to vector<8x32xf32>
    %65 = vector.shape_cast %61 : vector<8x32xf32> to vector<1x8x32xf32>
    tpu.vector_store %arg12[%62, %c0_43, %c0_44], %65 {strides = array<i32>} : memref<8x8x32xf32, #tpu.memory_space<vmem>>, vector<1x8x32xf32>,
    %c0_45 = arith.constant 0 : index
    %c0_46 = arith.constant 0 : index
    %66 = vector.load %arg2[%c0_45, %c0_46] : memref<32x64xf32, #tpu.memory_space<vmem>>, vector<32x64xf32>
    %cst_47 = arith.constant dense<0.000000e+00> : vector<8x64xf32>
    %67 = tpu.matmul %61, %66, %cst_47 {dimension_numbers = #tpu.dot_dimension_numbers<[1], [0], [0], [1], [0, 0, 1, 1], [], []>} : vector<8x32xf32>, vector<32x64xf32>, vector<8x64xf32> -> vector<8x64xf32>
    %68 = vector.extract_strided_slice %67 {offsets = [0, 0], sizes = [8, 32], strides = [1, 1]} : vector<8x64xf32> to vector<8x32xf32>
    %69 = arith.index_cast %c2_i32 : i32 to index
    %c0_48 = arith.constant 0 : index
    %c0_49 = arith.constant 0 : index
    %70 = vector.load %arg9[%69, %c0_48, %c0_49] : memref<8x8x32xf32, #tpu.memory_space<vmem>>, vector<1x8x32xf32>
    %71 = vector.shape_cast %70 : vector<1x8x32xf32> to vector<8x32xf32>
    %72 = arith.addf %68, %71 : vector<8x32xf32>
    %73 = math.tanh %72 : vector<8x32xf32>
    %74 = arith.index_cast %c2_i32 : i32 to index
    %c0_50 = arith.constant 0 : index
    %c0_51 = arith.constant 0 : index
    %75 = vector.load %arg13[%74, %c0_50, %c0_51] : memref<8x8x32xf32, #tpu.memory_space<vmem>>, vector<1x8x32xf32>
    %76 = vector.shape_cast %75 : vector<1x8x32xf32> to vector<8x32xf32>
    %77 = vector.shape_cast %73 : vector<8x32xf32> to vector<1x8x32xf32>
    tpu.vector_store %arg13[%74, %c0_50, %c0_51], %77 {strides = array<i32>} : memref<8x8x32xf32, #tpu.memory_space<vmem>>, vector<1x8x32xf32>,
    %78 = vector.extract_strided_slice %67 {offsets = [0, 32], sizes = [8, 32], strides = [1, 1]} : vector<8x64xf32> to vector<8x32xf32>
    %c0_52 = arith.constant 0 : index
    %c0_53 = arith.constant 0 : index
    %79 = vector.load %arg3[%c0_52, %c0_53] : memref<32x32xf32, #tpu.memory_space<vmem>>, vector<32x32xf32>
    %cst_54 = arith.constant dense<0.000000e+00> : vector<8x32xf32>
    %80 = tpu.matmul %73, %79, %cst_54 {dimension_numbers = #tpu.dot_dimension_numbers<[1], [0], [0], [1], [0, 0, 1, 1], [], []>} : vector<8x32xf32>, vector<32x32xf32>, vector<8x32xf32> -> vector<8x32xf32>
    %81 = arith.addf %78, %80 : vector<8x32xf32>
    %82 = arith.index_cast %c2_i32 : i32 to index
    %c0_55 = arith.constant 0 : index
    %c0_56 = arith.constant 0 : index
    %83 = vector.load %arg10[%82, %c0_55, %c0_56] : memref<8x8x32xf32, #tpu.memory_space<vmem>>, vector<1x8x32xf32>
    %84 = vector.shape_cast %83 : vector<1x8x32xf32> to vector<8x32xf32>
    %85 = arith.addf %81, %84 : vector<8x32xf32>
    %c3_i32 = arith.constant 3 : i32
    %86 = arith.index_cast %c3_i32 : i32 to index
    %c0_57 = arith.constant 0 : index
    %c0_58 = arith.constant 0 : index
    %87 = vector.load %arg12[%86, %c0_57, %c0_58] : memref<8x8x32xf32, #tpu.memory_space<vmem>>, vector<1x8x32xf32>
    %88 = vector.shape_cast %87 : vector<1x8x32xf32> to vector<8x32xf32>
    %89 = vector.shape_cast %85 : vector<8x32xf32> to vector<1x8x32xf32>
    tpu.vector_store %arg12[%86, %c0_57, %c0_58], %89 {strides = array<i32>} : memref<8x8x32xf32, #tpu.memory_space<vmem>>, vector<1x8x32xf32>,
    %c0_59 = arith.constant 0 : index
    %c0_60 = arith.constant 0 : index
    %90 = vector.load %arg2[%c0_59, %c0_60] : memref<32x64xf32, #tpu.memory_space<vmem>>, vector<32x64xf32>
    %cst_61 = arith.constant dense<0.000000e+00> : vector<8x64xf32>
    %91 = tpu.matmul %85, %90, %cst_61 {dimension_numbers = #tpu.dot_dimension_numbers<[1], [0], [0], [1], [0, 0, 1, 1], [], []>} : vector<8x32xf32>, vector<32x64xf32>, vector<8x64xf32> -> vector<8x64xf32>
    %92 = vector.extract_strided_slice %91 {offsets = [0, 0], sizes = [8, 32], strides = [1, 1]} : vector<8x64xf32> to vector<8x32xf32>
    %93 = arith.index_cast %c3_i32 : i32 to index
    %c0_62 = arith.constant 0 : index
    %c0_63 = arith.constant 0 : index
    %94 = vector.load %arg9[%93, %c0_62, %c0_63] : memref<8x8x32xf32, #tpu.memory_space<vmem>>, vector<1x8x32xf32>
    %95 = vector.shape_cast %94 : vector<1x8x32xf32> to vector<8x32xf32>
    %96 = arith.addf %92, %95 : vector<8x32xf32>
    %97 = math.tanh %96 : vector<8x32xf32>
    %98 = arith.index_cast %c3_i32 : i32 to index
    %c0_64 = arith.constant 0 : index
    %c0_65 = arith.constant 0 : index
    %99 = vector.load %arg13[%98, %c0_64, %c0_65] : memref<8x8x32xf32, #tpu.memory_space<vmem>>, vector<1x8x32xf32>
    %100 = vector.shape_cast %99 : vector<1x8x32xf32> to vector<8x32xf32>
    %101 = vector.shape_cast %97 : vector<8x32xf32> to vector<1x8x32xf32>
    tpu.vector_store %arg13[%98, %c0_64, %c0_65], %101 {strides = array<i32>} : memref<8x8x32xf32, #tpu.memory_space<vmem>>, vector<1x8x32xf32>,
    %102 = vector.extract_strided_slice %91 {offsets = [0, 32], sizes = [8, 32], strides = [1, 1]} : vector<8x64xf32> to vector<8x32xf32>
    %c0_66 = arith.constant 0 : index
    %c0_67 = arith.constant 0 : index
    %103 = vector.load %arg3[%c0_66, %c0_67] : memref<32x32xf32, #tpu.memory_space<vmem>>, vector<32x32xf32>
    %cst_68 = arith.constant dense<0.000000e+00> : vector<8x32xf32>
    %104 = tpu.matmul %97, %103, %cst_68 {dimension_numbers = #tpu.dot_dimension_numbers<[1], [0], [0], [1], [0, 0, 1, 1], [], []>} : vector<8x32xf32>, vector<32x32xf32>, vector<8x32xf32> -> vector<8x32xf32>
    %105 = arith.addf %102, %104 : vector<8x32xf32>
    %106 = arith.index_cast %c3_i32 : i32 to index
    %c0_69 = arith.constant 0 : index
    %c0_70 = arith.constant 0 : index
    %107 = vector.load %arg10[%106, %c0_69, %c0_70] : memref<8x8x32xf32, #tpu.memory_space<vmem>>, vector<1x8x32xf32>
    %108 = vector.shape_cast %107 : vector<1x8x32xf32> to vector<8x32xf32>
    %109 = arith.addf %105, %108 : vector<8x32xf32>
    %c4_i32 = arith.constant 4 : i32
    %110 = arith.index_cast %c4_i32 : i32 to index
    %c0_71 = arith.constant 0 : index
    %c0_72 = arith.constant 0 : index
    %111 = vector.load %arg12[%110, %c0_71, %c0_72] : memref<8x8x32xf32, #tpu.memory_space<vmem>>, vector<1x8x32xf32>
    %112 = vector.shape_cast %111 : vector<1x8x32xf32> to vector<8x32xf32>
    %113 = vector.shape_cast %109 : vector<8x32xf32> to vector<1x8x32xf32>
    tpu.vector_store %arg12[%110, %c0_71, %c0_72], %113 {strides = array<i32>} : memref<8x8x32xf32, #tpu.memory_space<vmem>>, vector<1x8x32xf32>,
    %c0_73 = arith.constant 0 : index
    %c0_74 = arith.constant 0 : index
    %114 = vector.load %arg2[%c0_73, %c0_74] : memref<32x64xf32, #tpu.memory_space<vmem>>, vector<32x64xf32>
    %cst_75 = arith.constant dense<0.000000e+00> : vector<8x64xf32>
    %115 = tpu.matmul %109, %114, %cst_75 {dimension_numbers = #tpu.dot_dimension_numbers<[1], [0], [0], [1], [0, 0, 1, 1], [], []>} : vector<8x32xf32>, vector<32x64xf32>, vector<8x64xf32> -> vector<8x64xf32>
    %116 = vector.extract_strided_slice %115 {offsets = [0, 0], sizes = [8, 32], strides = [1, 1]} : vector<8x64xf32> to vector<8x32xf32>
    %117 = arith.index_cast %c4_i32 : i32 to index
    %c0_76 = arith.constant 0 : index
    %c0_77 = arith.constant 0 : index
    %118 = vector.load %arg9[%117, %c0_76, %c0_77] : memref<8x8x32xf32, #tpu.memory_space<vmem>>, vector<1x8x32xf32>
    %119 = vector.shape_cast %118 : vector<1x8x32xf32> to vector<8x32xf32>
    %120 = arith.addf %116, %119 : vector<8x32xf32>
    %121 = math.tanh %120 : vector<8x32xf32>
    %122 = arith.index_cast %c4_i32 : i32 to index
    %c0_78 = arith.constant 0 : index
    %c0_79 = arith.constant 0 : index
    %123 = vector.load %arg13[%122, %c0_78, %c0_79] : memref<8x8x32xf32, #tpu.memory_space<vmem>>, vector<1x8x32xf32>
    %124 = vector.shape_cast %123 : vector<1x8x32xf32> to vector<8x32xf32>
    %125 = vector.shape_cast %121 : vector<8x32xf32> to vector<1x8x32xf32>
    tpu.vector_store %arg13[%122, %c0_78, %c0_79], %125 {strides = array<i32>} : memref<8x8x32xf32, #tpu.memory_space<vmem>>, vector<1x8x32xf32>,
    %126 = vector.extract_strided_slice %115 {offsets = [0, 32], sizes = [8, 32], strides = [1, 1]} : vector<8x64xf32> to vector<8x32xf32>
    %c0_80 = arith.constant 0 : index
    %c0_81 = arith.constant 0 : index
    %127 = vector.load %arg3[%c0_80, %c0_81] : memref<32x32xf32, #tpu.memory_space<vmem>>, vector<32x32xf32>
    %cst_82 = arith.constant dense<0.000000e+00> : vector<8x32xf32>
    %128 = tpu.matmul %121, %127, %cst_82 {dimension_numbers = #tpu.dot_dimension_numbers<[1], [0], [0], [1], [0, 0, 1, 1], [], []>} : vector<8x32xf32>, vector<32x32xf32>, vector<8x32xf32> -> vector<8x32xf32>
    %129 = arith.addf %126, %128 : vector<8x32xf32>
    %130 = arith.index_cast %c4_i32 : i32 to index
    %c0_83 = arith.constant 0 : index
    %c0_84 = arith.constant 0 : index
    %131 = vector.load %arg10[%130, %c0_83, %c0_84] : memref<8x8x32xf32, #tpu.memory_space<vmem>>, vector<1x8x32xf32>
    %132 = vector.shape_cast %131 : vector<1x8x32xf32> to vector<8x32xf32>
    %133 = arith.addf %129, %132 : vector<8x32xf32>
    %c5_i32 = arith.constant 5 : i32
    %134 = arith.index_cast %c5_i32 : i32 to index
    %c0_85 = arith.constant 0 : index
    %c0_86 = arith.constant 0 : index
    %135 = vector.load %arg12[%134, %c0_85, %c0_86] : memref<8x8x32xf32, #tpu.memory_space<vmem>>, vector<1x8x32xf32>
    %136 = vector.shape_cast %135 : vector<1x8x32xf32> to vector<8x32xf32>
    %137 = vector.shape_cast %133 : vector<8x32xf32> to vector<1x8x32xf32>
    tpu.vector_store %arg12[%134, %c0_85, %c0_86], %137 {strides = array<i32>} : memref<8x8x32xf32, #tpu.memory_space<vmem>>, vector<1x8x32xf32>,
    %c0_87 = arith.constant 0 : index
    %c0_88 = arith.constant 0 : index
    %138 = vector.load %arg2[%c0_87, %c0_88] : memref<32x64xf32, #tpu.memory_space<vmem>>, vector<32x64xf32>
    %cst_89 = arith.constant dense<0.000000e+00> : vector<8x64xf32>
    %139 = tpu.matmul %133, %138, %cst_89 {dimension_numbers = #tpu.dot_dimension_numbers<[1], [0], [0], [1], [0, 0, 1, 1], [], []>} : vector<8x32xf32>, vector<32x64xf32>, vector<8x64xf32> -> vector<8x64xf32>
    %140 = vector.extract_strided_slice %139 {offsets = [0, 0], sizes = [8, 32], strides = [1, 1]} : vector<8x64xf32> to vector<8x32xf32>
    %141 = arith.index_cast %c5_i32 : i32 to index
    %c0_90 = arith.constant 0 : index
    %c0_91 = arith.constant 0 : index
    %142 = vector.load %arg9[%141, %c0_90, %c0_91] : memref<8x8x32xf32, #tpu.memory_space<vmem>>, vector<1x8x32xf32>
    %143 = vector.shape_cast %142 : vector<1x8x32xf32> to vector<8x32xf32>
    %144 = arith.addf %140, %143 : vector<8x32xf32>
    %145 = math.tanh %144 : vector<8x32xf32>
    %146 = arith.index_cast %c5_i32 : i32 to index
    %c0_92 = arith.constant 0 : index
    %c0_93 = arith.constant 0 : index
    %147 = vector.load %arg13[%146, %c0_92, %c0_93] : memref<8x8x32xf32, #tpu.memory_space<vmem>>, vector<1x8x32xf32>
    %148 = vector.shape_cast %147 : vector<1x8x32xf32> to vector<8x32xf32>
    %149 = vector.shape_cast %145 : vector<8x32xf32> to vector<1x8x32xf32>
    tpu.vector_store %arg13[%146, %c0_92, %c0_93], %149 {strides = array<i32>} : memref<8x8x32xf32, #tpu.memory_space<vmem>>, vector<1x8x32xf32>,
    %150 = vector.extract_strided_slice %139 {offsets = [0, 32], sizes = [8, 32], strides = [1, 1]} : vector<8x64xf32> to vector<8x32xf32>
    %c0_94 = arith.constant 0 : index
    %c0_95 = arith.constant 0 : index
    %151 = vector.load %arg3[%c0_94, %c0_95] : memref<32x32xf32, #tpu.memory_space<vmem>>, vector<32x32xf32>
    %cst_96 = arith.constant dense<0.000000e+00> : vector<8x32xf32>
    %152 = tpu.matmul %145, %151, %cst_96 {dimension_numbers = #tpu.dot_dimension_numbers<[1], [0], [0], [1], [0, 0, 1, 1], [], []>} : vector<8x32xf32>, vector<32x32xf32>, vector<8x32xf32> -> vector<8x32xf32>
    %153 = arith.addf %150, %152 : vector<8x32xf32>
    %154 = arith.index_cast %c5_i32 : i32 to index
    %c0_97 = arith.constant 0 : index
    %c0_98 = arith.constant 0 : index
    %155 = vector.load %arg10[%154, %c0_97, %c0_98] : memref<8x8x32xf32, #tpu.memory_space<vmem>>, vector<1x8x32xf32>
    %156 = vector.shape_cast %155 : vector<1x8x32xf32> to vector<8x32xf32>
    %157 = arith.addf %153, %156 : vector<8x32xf32>
    %c6_i32 = arith.constant 6 : i32
    %158 = arith.index_cast %c6_i32 : i32 to index
    %c0_99 = arith.constant 0 : index
    %c0_100 = arith.constant 0 : index
    %159 = vector.load %arg12[%158, %c0_99, %c0_100] : memref<8x8x32xf32, #tpu.memory_space<vmem>>, vector<1x8x32xf32>
    %160 = vector.shape_cast %159 : vector<1x8x32xf32> to vector<8x32xf32>
    %161 = vector.shape_cast %157 : vector<8x32xf32> to vector<1x8x32xf32>
    tpu.vector_store %arg12[%158, %c0_99, %c0_100], %161 {strides = array<i32>} : memref<8x8x32xf32, #tpu.memory_space<vmem>>, vector<1x8x32xf32>,
    %c0_101 = arith.constant 0 : index
    %c0_102 = arith.constant 0 : index
    %162 = vector.load %arg2[%c0_101, %c0_102] : memref<32x64xf32, #tpu.memory_space<vmem>>, vector<32x64xf32>
    %cst_103 = arith.constant dense<0.000000e+00> : vector<8x64xf32>
    %163 = tpu.matmul %157, %162, %cst_103 {dimension_numbers = #tpu.dot_dimension_numbers<[1], [0], [0], [1], [0, 0, 1, 1], [], []>} : vector<8x32xf32>, vector<32x64xf32>, vector<8x64xf32> -> vector<8x64xf32>
    %164 = vector.extract_strided_slice %163 {offsets = [0, 0], sizes = [8, 32], strides = [1, 1]} : vector<8x64xf32> to vector<8x32xf32>
    %165 = arith.index_cast %c6_i32 : i32 to index
    %c0_104 = arith.constant 0 : index
    %c0_105 = arith.constant 0 : index
    %166 = vector.load %arg9[%165, %c0_104, %c0_105] : memref<8x8x32xf32, #tpu.memory_space<vmem>>, vector<1x8x32xf32>
    %167 = vector.shape_cast %166 : vector<1x8x32xf32> to vector<8x32xf32>
    %168 = arith.addf %164, %167 : vector<8x32xf32>
    %169 = math.tanh %168 : vector<8x32xf32>
    %170 = arith.index_cast %c6_i32 : i32 to index
    %c0_106 = arith.constant 0 : index
    %c0_107 = arith.constant 0 : index
    %171 = vector.load %arg13[%170, %c0_106, %c0_107] : memref<8x8x32xf32, #tpu.memory_space<vmem>>, vector<1x8x32xf32>
    %172 = vector.shape_cast %171 : vector<1x8x32xf32> to vector<8x32xf32>
    %173 = vector.shape_cast %169 : vector<8x32xf32> to vector<1x8x32xf32>
    tpu.vector_store %arg13[%170, %c0_106, %c0_107], %173 {strides = array<i32>} : memref<8x8x32xf32, #tpu.memory_space<vmem>>, vector<1x8x32xf32>,
    %174 = vector.extract_strided_slice %163 {offsets = [0, 32], sizes = [8, 32], strides = [1, 1]} : vector<8x64xf32> to vector<8x32xf32>
    %c0_108 = arith.constant 0 : index
    %c0_109 = arith.constant 0 : index
    %175 = vector.load %arg3[%c0_108, %c0_109] : memref<32x32xf32, #tpu.memory_space<vmem>>, vector<32x32xf32>
    %cst_110 = arith.constant dense<0.000000e+00> : vector<8x32xf32>
    %176 = tpu.matmul %169, %175, %cst_110 {dimension_numbers = #tpu.dot_dimension_numbers<[1], [0], [0], [1], [0, 0, 1, 1], [], []>} : vector<8x32xf32>, vector<32x32xf32>, vector<8x32xf32> -> vector<8x32xf32>
    %177 = arith.addf %174, %176 : vector<8x32xf32>
    %178 = arith.index_cast %c6_i32 : i32 to index
    %c0_111 = arith.constant 0 : index
    %c0_112 = arith.constant 0 : index
    %179 = vector.load %arg10[%178, %c0_111, %c0_112] : memref<8x8x32xf32, #tpu.memory_space<vmem>>, vector<1x8x32xf32>
    %180 = vector.shape_cast %179 : vector<1x8x32xf32> to vector<8x32xf32>
    %181 = arith.addf %177, %180 : vector<8x32xf32>
    %c7_i32 = arith.constant 7 : i32
    %182 = arith.index_cast %c7_i32 : i32 to index
    %c0_113 = arith.constant 0 : index
    %c0_114 = arith.constant 0 : index
    %183 = vector.load %arg12[%182, %c0_113, %c0_114] : memref<8x8x32xf32, #tpu.memory_space<vmem>>, vector<1x8x32xf32>
    %184 = vector.shape_cast %183 : vector<1x8x32xf32> to vector<8x32xf32>
    %185 = vector.shape_cast %181 : vector<8x32xf32> to vector<1x8x32xf32>
    tpu.vector_store %arg12[%182, %c0_113, %c0_114], %185 {strides = array<i32>} : memref<8x8x32xf32, #tpu.memory_space<vmem>>, vector<1x8x32xf32>,
    %c0_115 = arith.constant 0 : index
    %c0_116 = arith.constant 0 : index
    %186 = vector.load %arg2[%c0_115, %c0_116] : memref<32x64xf32, #tpu.memory_space<vmem>>, vector<32x64xf32>
    %cst_117 = arith.constant dense<0.000000e+00> : vector<8x64xf32>
    %187 = tpu.matmul %181, %186, %cst_117 {dimension_numbers = #tpu.dot_dimension_numbers<[1], [0], [0], [1], [0, 0, 1, 1], [], []>} : vector<8x32xf32>, vector<32x64xf32>, vector<8x64xf32> -> vector<8x64xf32>
    %188 = vector.extract_strided_slice %187 {offsets = [0, 0], sizes = [8, 32], strides = [1, 1]} : vector<8x64xf32> to vector<8x32xf32>
    %189 = arith.index_cast %c7_i32 : i32 to index
    %c0_118 = arith.constant 0 : index
    %c0_119 = arith.constant 0 : index
    %190 = vector.load %arg9[%189, %c0_118, %c0_119] : memref<8x8x32xf32, #tpu.memory_space<vmem>>, vector<1x8x32xf32>
    %191 = vector.shape_cast %190 : vector<1x8x32xf32> to vector<8x32xf32>
    %192 = arith.addf %188, %191 : vector<8x32xf32>
    %193 = math.tanh %192 : vector<8x32xf32>
    %194 = arith.index_cast %c7_i32 : i32 to index
    %c0_120 = arith.constant 0 : index
    %c0_121 = arith.constant 0 : index
    %195 = vector.load %arg13[%194, %c0_120, %c0_121] : memref<8x8x32xf32, #tpu.memory_space<vmem>>, vector<1x8x32xf32>
    %196 = vector.shape_cast %195 : vector<1x8x32xf32> to vector<8x32xf32>
    %197 = vector.shape_cast %193 : vector<8x32xf32> to vector<1x8x32xf32>
    tpu.vector_store %arg13[%194, %c0_120, %c0_121], %197 {strides = array<i32>} : memref<8x8x32xf32, #tpu.memory_space<vmem>>, vector<1x8x32xf32>,
    %198 = vector.extract_strided_slice %187 {offsets = [0, 32], sizes = [8, 32], strides = [1, 1]} : vector<8x64xf32> to vector<8x32xf32>
    %c0_122 = arith.constant 0 : index
    %c0_123 = arith.constant 0 : index
    %199 = vector.load %arg3[%c0_122, %c0_123] : memref<32x32xf32, #tpu.memory_space<vmem>>, vector<32x32xf32>
    %cst_124 = arith.constant dense<0.000000e+00> : vector<8x32xf32>
    %200 = tpu.matmul %193, %199, %cst_124 {dimension_numbers = #tpu.dot_dimension_numbers<[1], [0], [0], [1], [0, 0, 1, 1], [], []>} : vector<8x32xf32>, vector<32x32xf32>, vector<8x32xf32> -> vector<8x32xf32>
    %201 = arith.addf %198, %200 : vector<8x32xf32>
    %202 = arith.index_cast %c7_i32 : i32 to index
    %c0_125 = arith.constant 0 : index
    %c0_126 = arith.constant 0 : index
    %203 = vector.load %arg10[%202, %c0_125, %c0_126] : memref<8x8x32xf32, #tpu.memory_space<vmem>>, vector<1x8x32xf32>
    %204 = vector.shape_cast %203 : vector<1x8x32xf32> to vector<8x32xf32>
    %205 = arith.addf %201, %204 : vector<8x32xf32>
    %c8_i32 = arith.constant 8 : i32
    %c0_127 = arith.constant 0 : index
    %c0_128 = arith.constant 0 : index
    %206 = vector.load %arg8[%c0_127, %c0_128] : memref<8x32xf32, #tpu.memory_space<vmem>>, vector<8x32xf32>
    tpu.vector_store %arg8[%c0_127, %c0_128], %205 {strides = array<i32>} : memref<8x32xf32, #tpu.memory_space<vmem>>, vector<8x32xf32>,
    %c0_129 = arith.constant 0 : index
    %c0_130 = arith.constant 0 : index
    %c0_131 = arith.constant 0 : index
    %207 = vector.load %arg12[%c0_129, %c0_130, %c0_131] : memref<8x8x32xf32, #tpu.memory_space<vmem>>, vector<8x8x32xf32>
    %208 = vector.shape_cast %207 : vector<8x8x32xf32> to vector<64x32xf32>
    %c0_132 = arith.constant 0 : index
    %c0_133 = arith.constant 0 : index
    %c0_134 = arith.constant 0 : index
    %209 = vector.load %arg13[%c0_132, %c0_133, %c0_134] : memref<8x8x32xf32, #tpu.memory_space<vmem>>, vector<8x8x32xf32>
    %210 = vector.shape_cast %209 : vector<8x8x32xf32> to vector<64x32xf32>
    %c0_135 = arith.constant 0 : index
    %c0_136 = arith.constant 0 : index
    %211 = vector.load %arg5[%c0_135, %c0_136] : memref<32x4xf32, #tpu.memory_space<vmem>>, vector<32x4xf32>
    %cst_137 = arith.constant dense<0.000000e+00> : vector<64x4xf32>
    %212 = tpu.matmul %208, %211, %cst_137 {dimension_numbers = #tpu.dot_dimension_numbers<[1], [0], [0], [1], [0, 0, 1, 1], [], []>} : vector<64x32xf32>, vector<32x4xf32>, vector<64x4xf32> -> vector<64x4xf32>
    %c0_138 = arith.constant 0 : index
    %c0_139 = arith.constant 0 : index
    %213 = vector.load %arg6[%c0_138, %c0_139] : memref<32x4xf32, #tpu.memory_space<vmem>>, vector<32x4xf32>
    %cst_140 = arith.constant dense<0.000000e+00> : vector<64x4xf32>
    %214 = tpu.matmul %210, %213, %cst_140 {dimension_numbers = #tpu.dot_dimension_numbers<[1], [0], [0], [1], [0, 0, 1, 1], [], []>} : vector<64x32xf32>, vector<32x4xf32>, vector<64x4xf32> -> vector<64x4xf32>
    %215 = arith.addf %212, %214 : vector<64x4xf32>
    %c0_141 = arith.constant 0 : index
    %c0_142 = arith.constant 0 : index
    %c0_143 = arith.constant 0 : index
    %216 = vector.load %arg11[%c0_141, %c0_142, %c0_143] : memref<8x8x4xf32, #tpu.memory_space<vmem>>, vector<8x8x4xf32>
    %217 = vector.shape_cast %216 : vector<8x8x4xf32> to vector<64x4xf32>
    %218 = arith.addf %215, %217 : vector<64x4xf32>
    %219 = vector.shape_cast %218 : vector<64x4xf32> to vector<8x8x4xf32>
    %c0_144 = arith.constant 0 : index
    %c0_145 = arith.constant 0 : index
    %c0_146 = arith.constant 0 : index
    %220 = vector.load %arg7[%c0_144, %c0_145, %c0_146] : memref<8x8x4xf32, #tpu.memory_space<vmem>>, vector<8x8x4xf32>
    tpu.vector_store %arg7[%c0_144, %c0_145, %c0_146], %219 {strides = array<i32>} : memref<8x8x4xf32, #tpu.memory_space<vmem>>, vector<8x8x4xf32>,
    return
  }
}

</mosaic_0001>

<llo_original>
// kernel: tpu_custom_call.1
$region0: #{tpu_custom_call.1}
  #allocation0 [shape = 'u32[]', space=smem, size = 0x4, offset = 0x4, fixed_abs, tag = 'smem constant byte address 0x4 - core index']
  #allocation1 [shape = 'u32[144,128]{1,0:T(1,128)}', space=vmem, size = 0x12000, scoped, tag = 'internal scratch']
  #allocation2 [shape = 'f32[8,8,32]{2,1,0:T(8,128)}', space=vmem, size = 0x8000, scoped, tag = 'scratch operand']
  #allocation3 [shape = 'f32[8,8,32]{2,1,0:T(8,128)}', space=vmem, size = 0x8000, scoped, tag = 'scratch operand']
  #allocation4 [shape = 'f32[8,8,4]{2,1,0:T(8,128)}', space=vmem, size = 0x8000, scoped, tag = 'scratch operand']
  #allocation5 [shape = 'f32[8,8,32]{2,1,0:T(8,128)}', space=vmem, size = 0x8000, scoped, tag = 'scratch operand']
  #allocation6 [shape = 'f32[8,8,32]{2,1,0:T(8,128)}', space=vmem, size = 0x8000, scoped, tag = 'scratch operand']
  %s0 = inlined_call_operand.vmem [shape: f32[8,8,4], index: 0, kind: input, shape index: {}]
  %s1 = inlined_call_operand.vmem [shape: f32[8,32], index: 1, kind: input, shape index: {}]
  %s2 = inlined_call_operand.vmem [shape: f32[32,64], index: 2, kind: input, shape index: {}]
  %s3 = inlined_call_operand.vmem [shape: f32[32,32], index: 3, kind: input, shape index: {}]
  %s4 = inlined_call_operand.vmem [shape: f32[4,68], index: 4, kind: input, shape index: {}]
  %s5 = inlined_call_operand.vmem [shape: f32[32,4], index: 5, kind: input, shape index: {}]
  %s6 = inlined_call_operand.vmem [shape: f32[32,4], index: 6, kind: input, shape index: {}]
  %s7 = inlined_call_operand.vmem [shape: f32[8,8,4], index: 7, kind: output, shape index: {0}]
  %s8 = inlined_call_operand.hbm [shape: f32[8,32], index: 8, kind: output, shape index: {1}]
  %9 = xla_tuple %s7, %s8
  %s10 = sld [smem:[#allocation0]]
  $region46: #{tpu_custom_call.1} parent=0
    _
  %s12 = ssub.s32 1, %s10
  %s13 = scalar_select 0, %s12, %s10
  $region1: #{tpu_custom_call.1} parent=0
    #allocation7 [shape = 'u8[4096]{0}', space=vmem, size = 0x1000, scoped, tag = 'output window, operand 1, single buffered']
    #allocation8 [shape = 's32[1]{0}', space=sflag, size = 0x4, scoped, tag = 'scoped memory for tpu_custom_call.1']
    %14 = vsyncpa [#allocation8], 0
    // Predicated region
    $region2: #{tpu_custom_call.1} parent=1 // pred_check
      _
    $region3: #{tpu_custom_call.1} parent=1 // pred_check_branch
      %16 = sbr.rel (0) target = $region5
    $region4: #{tpu_custom_call.1} parent=1 // pred_region
      _
    $region5: #{tpu_custom_call.1} parent=1 // pred_fallthru
      _
    // Predicated region
    $region6: #{tpu_custom_call.1} parent=1 // pred_check
      _
    $region7: #{tpu_custom_call.1} parent=1 // pred_check_branch
      %18 = sbr.rel (0) target = $region9
    $region8: #{tpu_custom_call.1} parent=1 // pred_region
      _
    $region9: #{tpu_custom_call.1} parent=1 // pred_fallthru
      _
    // Predicated region
    $region10: #{tpu_custom_call.1} parent=1 // pred_check
      _
    $region11: #{tpu_custom_call.1} parent=1 // pred_check_branch
      %20 = sbr.rel (0) target = $region13
    $region12: #{tpu_custom_call.1} parent=1 // pred_region
      _
    $region13: #{tpu_custom_call.1} parent=1 // pred_fallthru
      _
    // Predicated region
    $region14: #{tpu_custom_call.1} parent=1 // pred_check
      _
    $region15: #{tpu_custom_call.1} parent=1 // pred_check_branch
      %22 = sbr.rel (0) target = $region17
    $region16: #{tpu_custom_call.1} parent=1 // pred_region
      _
    $region17: #{tpu_custom_call.1} parent=1 // pred_fallthru
      _
    // Predicated region
    $region18: #{tpu_custom_call.1} parent=1 // pred_check
      _
    $region19: #{tpu_custom_call.1} parent=1 // pred_check_branch
      %24 = sbr.rel (0) target = $region21
    $region20: #{tpu_custom_call.1} parent=1 // pred_region
      _
    $region21: #{tpu_custom_call.1} parent=1 // pred_fallthru
      _
    // Predicated region
    $region22: #{tpu_custom_call.1} parent=1 // pred_check
      _
    $region23: #{tpu_custom_call.1} parent=1 // pred_check_branch
      %26 = sbr.rel (0) target = $region25
    $region24: #{tpu_custom_call.1} parent=1 // pred_region
      _
    $region25: #{tpu_custom_call.1} parent=1 // pred_fallthru
      _
    // Predicated region
    $region26: #{tpu_custom_call.1} parent=1 // pred_check
      _
    $region27: #{tpu_custom_call.1} parent=1 // pred_check_branch
      %28 = sbr.rel (0) target = $region29
    $region28: #{tpu_custom_call.1} parent=1 // pred_region
      _
    $region29: #{tpu_custom_call.1} parent=1 // pred_fallthru
      _
    %v29 = vld [vmem:[%s0] sm:$0xff]
    %v30 = vld [vmem:[%s0 + $0x8] sm:$0xff]
    %v31 = vld [vmem:[%s0 + $0x10] sm:$0xff]
    %v32 = vld [vmem:[%s0 + $0x18] sm:$0xff]
    %v33 = vld [vmem:[%s0 + $0x20] sm:$0xff]
    %v34 = vld [vmem:[%s0 + $0x28] sm:$0xff]
    %v35 = vld [vmem:[%s0 + $0x30] sm:$0xff]
    %v36 = vld [vmem:[%s0 + $0x38] sm:$0xff]
    %v37 = vld [vmem:[%s4] sm:$0xf]
    %vm38 = vcmask 31744
    %v40 = vsel %vm38, %v29, 0
    %v43 = vsel %vm38, %v30, 0
    %v46 = vsel %vm38, %v31, 0
    %v49 = vsel %vm38, %v32, 0
    %v52 = vsel %vm38, %v33, 0
    %v55 = vsel %vm38, %v34, 0
    %v58 = vsel %vm38, %v35, 0
    %v61 = vsel %vm38, %v36, 0
    %vm63 = vcmask 1043456
    %v65 = vsel %vm63, %v37, 0
    %67 = vmatprep.subr.mxu0 0.0
    %68 = vmatpush1.msra.mxu0 %v65
    %69 = vmatprep.subr.mxu0 0.0
    %70 = vmatpush1.msra.mxu0 0.0
    %71 = vmatprep.subr.mxu0 0.0
    %72 = vmatpush1.msra.mxu0 0.0
    %73 = vmatprep.subr.mxu0 0.0
    %74 = vmatpush1.msra.mxu0 0.0
    %75 = vmatprep.subr.mxu0 0.0
    %76 = vmatpush1.msra.mxu0 0.0
    %77 = vmatprep.subr.mxu0 0.0
    %78 = vmatpush1.msra.mxu0 0.0
    %79 = vmatprep.subr.mxu0 0.0
    %80 = vmatpush1.msra.mxu0 0.0
    %81 = vmatprep.subr.mxu0 0.0
    %82 = vmatpush1.msra.mxu0 0.0
    %83 = vmatprep.subr.mxu0 0.0
    %84 = vmatpush1.msra.mxu0 0.0
    %85 = vmatprep.subr.mxu0 0.0
    %86 = vmatpush1.msra.mxu0 0.0
    %87 = vmatprep.subr.mxu0 0.0
    %88 = vmatpush1.msra.mxu0 0.0
    %89 = vmatprep.subr.mxu0 0.0
    %90 = vmatpush1.msra.mxu0 0.0
    %91 = vmatprep.subr.mxu0 0.0
    %92 = vmatpush1.msra.mxu0 0.0
    %93 = vmatprep.subr.mxu0 0.0
    %94 = vmatpush1.msra.mxu0 0.0
    %95 = vmatprep.subr.mxu0 0.0
    %96 = vmatpush1.msra.mxu0 0.0
    %97 = vmatprep.subr.mxu0 0.0
    %98 = vmatpush1.msra.mxu0 0.0
    %99 = vmatprep.subr.mxu0 0.0
    %100 = vmatpush1.msra.mxu0 0.0
    %101 = vmatprep.subr.mxu0 0.0
    %102 = vmatpush1.msra.mxu0 0.0
    %103 = vmatprep.subr.mxu0 0.0
    %104 = vmatpush1.msra.mxu0 0.0
    %105 = vmatprep.subr.mxu0 0.0
    %106 = vmatpush1.msra.mxu0 0.0
    %107 = vmatprep.subr.mxu0 0.0
    %108 = vmatpush1.msra.mxu0 0.0
    %109 = vmatprep.subr.mxu0 0.0
    %110 = vmatpush1.msra.mxu0 0.0
    %111 = vmatprep.subr.mxu0 0.0
    %112 = vmatpush1.msra.mxu0 0.0
    %113 = vmatprep.subr.mxu0 0.0
    %114 = vmatpush1.msra.mxu0 0.0
    %115 = vmatprep.subr.mxu0 0.0
    %116 = vmatpush1.msra.mxu0 0.0
    %117 = vmatprep.subr.mxu0 0.0
    %118 = vmatpush1.msra.mxu0 0.0
    %119 = vmatprep.subr.mxu0 0.0
    %120 = vmatpush1.msra.mxu0 0.0
    %121 = vmatprep.subr.mxu0 0.0
    %122 = vmatpush1.msra.mxu0 0.0
    %123 = vmatprep.subr.mxu0 0.0
    %124 = vmatpush1.msra.mxu0 0.0
    %125 = vmatprep.subr.mxu0 0.0
    %126 = vmatpush1.msra.mxu0 0.0
    %127 = vmatprep.subr.mxu0 0.0
    %128 = vmatpush1.msra.mxu0 0.0
    %129 = vmatprep.subr.mxu0 0.0
    %130 = vmatpush1.msra.mxu0 0.0
    %131 = vmatprep.mubr.f32.mxu0 0.0
    %132 = vmatmul.mubr.f32.gmra.mrb[0].mxu0 %v40
    %v133 = vpop.f32.mrb[0].mxu0
    %v134 = vadd.f32 0.0, %v133
    %v135 = vpop.f32.mrb[0].mxu0
    %136 = vmatprep.mubr.f32.mxu0 0.0
    %137 = vmatmul.mubr.f32.gmra.mrb[0].mxu0 %v43
    %v138 = vpop.f32.mrb[0].mxu0
    %v139 = vadd.f32 0.0, %v138
    %v140 = vpop.f32.mrb[0].mxu0
    %141 = vmatprep.mubr.f32.mxu0 0.0
    %142 = vmatmul.mubr.f32.gmra.mrb[0].mxu0 %v46
    %v143 = vpop.f32.mrb[0].mxu0
    %v144 = vadd.f32 0.0, %v143
    %v145 = vpop.f32.mrb[0].mxu0
    %146 = vmatprep.mubr.f32.mxu0 0.0
    %147 = vmatmul.mubr.f32.gmra.mrb[0].mxu0 %v49
    %v148 = vpop.f32.mrb[0].mxu0
    %v149 = vadd.f32 0.0, %v148
    %v150 = vpop.f32.mrb[0].mxu0
    %151 = vmatprep.mubr.f32.mxu0 0.0
    %152 = vmatmul.mubr.f32.gmra.mrb[0].mxu0 %v52
    %v153 = vpop.f32.mrb[0].mxu0
    %v154 = vadd.f32 0.0, %v153
    %v155 = vpop.f32.mrb[0].mxu0
    %156 = vmatprep.mubr.f32.mxu0 0.0
    %157 = vmatmul.mubr.f32.gmra.mrb[0].mxu0 %v55
    %v158 = vpop.f32.mrb[0].mxu0
    %v159 = vadd.f32 0.0, %v158
    %v160 = vpop.f32.mrb[0].mxu0
    %161 = vmatprep.mubr.f32.mxu0 0.0
    %162 = vmatmul.mubr.f32.gmra.mrb[0].mxu0 %v58
    %v163 = vpop.f32.mrb[0].mxu0
    %v164 = vadd.f32 0.0, %v163
    %v165 = vpop.f32.mrb[0].mxu0
    %166 = vmatprep.mubr.f32.mxu0 0.0
    %167 = vmatmul.mubr.f32.gmra.mrb[0].mxu0 %v61
    %v168 = vpop.f32.mrb[0].mxu0
    %v169 = vadd.f32 0.0, %v168
    %v170 = vpop.f32.mrb[0].mxu0
    %171 = vdwg.mxu0
    %vm172 = vcmask 261120
    %173 = vst.msk [vmem:[#allocation2] sm:$0xff] %vm172, %v134
    %174 = vst.msk [vmem:[#allocation2 + $0x8] sm:$0xff] %vm172, %v139
    %175 = vst.msk [vmem:[#allocation2 + $0x10] sm:$0xff] %vm172, %v144
    %176 = vst.msk [vmem:[#allocation2 + $0x18] sm:$0xff] %vm172, %v149
    %177 = vst.msk [vmem:[#allocation2 + $0x20] sm:$0xff] %vm172, %v154
    %178 = vst.msk [vmem:[#allocation2 + $0x28] sm:$0xff] %vm172, %v159
    %179 = vst.msk [vmem:[#allocation2 + $0x30] sm:$0xff] %vm172, %v164
    %180 = vst.msk [vmem:[#allocation2 + $0x38] sm:$0xff] %vm172, %v169
    %189 = vrot.lane.b32.xlu0 %v134, 96
    %v190 = vpop.permute.xlu0 %189
    %191 = vrot.lane.b32.xlu0 %v139, 96
    %v192 = vpop.permute.xlu0 %191
    %193 = vrot.lane.b32.xlu0 %v144, 96
    %v194 = vpop.permute.xlu0 %193
    %195 = vrot.lane.b32.xlu0 %v149, 96
    %v196 = vpop.permute.xlu0 %195
    %197 = vrot.lane.b32.xlu0 %v154, 96
    %v198 = vpop.permute.xlu0 %197
    %199 = vrot.lane.b32.xlu0 %v159, 96
    %v200 = vpop.permute.xlu0 %199
    %201 = vrot.lane.b32.xlu0 %v164, 96
    %v202 = vpop.permute.xlu0 %201
    %203 = vrot.lane.b32.xlu0 %v169, 96
    %v204 = vpop.permute.xlu0 %203
    %213 = vst.msk [vmem:[#allocation3] sm:$0xff] %vm172, %v190
    %214 = vst.msk [vmem:[#allocation3 + $0x8] sm:$0xff] %vm172, %v192
    %215 = vst.msk [vmem:[#allocation3 + $0x10] sm:$0xff] %vm172, %v194
    %216 = vst.msk [vmem:[#allocation3 + $0x18] sm:$0xff] %vm172, %v196
    %217 = vst.msk [vmem:[#allocation3 + $0x20] sm:$0xff] %vm172, %v198
    %218 = vst.msk [vmem:[#allocation3 + $0x28] sm:$0xff] %vm172, %v200
    %219 = vst.msk [vmem:[#allocation3 + $0x30] sm:$0xff] %vm172, %v202
    %220 = vst.msk [vmem:[#allocation3 + $0x38] sm:$0xff] %vm172, %v204
    %221 = vrot.lane.b32.xlu0 %v134, 64
    %v222 = vpop.permute.xlu0 %221
    %223 = vrot.lane.b32.xlu0 %v139, 64
    %v224 = vpop.permute.xlu0 %223
    %225 = vrot.lane.b32.xlu0 %v144, 64
    %v226 = vpop.permute.xlu0 %225
    %227 = vrot.lane.b32.xlu0 %v149, 64
    %v228 = vpop.permute.xlu0 %227
    %229 = vrot.lane.b32.xlu0 %v154, 64
    %v230 = vpop.permute.xlu0 %229
    %231 = vrot.lane.b32.xlu0 %v159, 64
    %v232 = vpop.permute.xlu0 %231
    %233 = vrot.lane.b32.xlu0 %v164, 64
    %v234 = vpop.permute.xlu0 %233
    %235 = vrot.lane.b32.xlu0 %v169, 64
    %v236 = vpop.permute.xlu0 %235
    %245 = vst.msk [vmem:[#allocation4] sm:$0xff] %vm38, %v222
    %246 = vst.msk [vmem:[#allocation4 + $0x8] sm:$0xff] %vm38, %v224
    %247 = vst.msk [vmem:[#allocation4 + $0x10] sm:$0xff] %vm38, %v226
    %248 = vst.msk [vmem:[#allocation4 + $0x18] sm:$0xff] %vm38, %v228
    %249 = vst.msk [vmem:[#allocation4 + $0x20] sm:$0xff] %vm38, %v230
    %250 = vst.msk [vmem:[#allocation4 + $0x28] sm:$0xff] %vm38, %v232
    %251 = vst.msk [vmem:[#allocation4 + $0x30] sm:$0xff] %vm38, %v234
    %252 = vst.msk [vmem:[#allocation4 + $0x38] sm:$0xff] %vm38, %v236
    %v253 = vld [vmem:[%s1] sm:$0xff]
    %254 = vst.msk [vmem:[#allocation5] sm:$0xff] %vm172, %v253
    %v255 = vld [vmem:[%s2] sm:$0xff]
    %v256 = vld [vmem:[%s2 + $0x8] sm:$0xff]
    %v257 = vld [vmem:[%s2 + $0x10] sm:$0xff]
    %v258 = vld [vmem:[%s2 + $0x18] sm:$0xff]
    %v260 = vsel %vm172, %v253, 0
    %262 = vmatprep.subr.mxu0 0.0
    %263 = vmatpush1.msra.mxu0 %v255
    %264 = vmatprep.subr.mxu0 0.0
    %265 = vmatpush1.msra.mxu0 %v256
    %266 = vmatprep.subr.mxu0 0.0
    %267 = vmatpush1.msra.mxu0 %v257
    %268 = vmatprep.subr.mxu0 0.0
    %269 = vmatpush1.msra.mxu0 %v258
    %270 = vmatprep.subr.mxu0 0.0
    %271 = vmatpush1.msra.mxu0 0.0
    %272 = vmatprep.subr.mxu0 0.0
    %273 = vmatpush1.msra.mxu0 0.0
    %274 = vmatprep.subr.mxu0 0.0
    %275 = vmatpush1.msra.mxu0 0.0
    %276 = vmatprep.subr.mxu0 0.0
    %277 = vmatpush1.msra.mxu0 0.0
    %278 = vmatprep.subr.mxu0 0.0
    %279 = vmatpush1.msra.mxu0 0.0
    %280 = vmatprep.subr.mxu0 0.0
    %281 = vmatpush1.msra.mxu0 0.0
    %282 = vmatprep.subr.mxu0 0.0
    %283 = vmatpush1.msra.mxu0 0.0
    %284 = vmatprep.subr.mxu0 0.0
    %285 = vmatpush1.msra.mxu0 0.0
    %286 = vmatprep.subr.mxu0 0.0
    %287 = vmatpush1.msra.mxu0 0.0
    %288 = vmatprep.subr.mxu0 0.0
    %289 = vmatpush1.msra.mxu0 0.0
    %290 = vmatprep.subr.mxu0 0.0
    %291 = vmatpush1.msra.mxu0 0.0
    %292 = vmatprep.subr.mxu0 0.0
    %293 = vmatpush1.msra.mxu0 0.0
    %294 = vmatprep.subr.mxu0 0.0
    %295 = vmatpush1.msra.mxu0 0.0
    %296 = vmatprep.subr.mxu0 0.0
    %297 = vmatpush1.msra.mxu0 0.0
    %298 = vmatprep.subr.mxu0 0.0
    %299 = vmatpush1.msra.mxu0 0.0
    %300 = vmatprep.subr.mxu0 0.0
    %301 = vmatpush1.msra.mxu0 0.0
    %302 = vmatprep.subr.mxu0 0.0
    %303 = vmatpush1.msra.mxu0 0.0
    %304 = vmatprep.subr.mxu0 0.0
    %305 = vmatpush1.msra.mxu0 0.0
    %306 = vmatprep.subr.mxu0 0.0
    %307 = vmatpush1.msra.mxu0 0.0
    %308 = vmatprep.subr.mxu0 0.0
    %309 = vmatpush1.msra.mxu0 0.0
    %310 = vmatprep.subr.mxu0 0.0
    %311 = vmatpush1.msra.mxu0 0.0
    %312 = vmatprep.subr.mxu0 0.0
    %313 = vmatpush1.msra.mxu0 0.0
    %314 = vmatprep.subr.mxu0 0.0
    %315 = vmatpush1.msra.mxu0 0.0
    %316 = vmatprep.subr.mxu0 0.0
    %317 = vmatpush1.msra.mxu0 0.0
    %318 = vmatprep.subr.mxu0 0.0
    %319 = vmatpush1.msra.mxu0 0.0
    %320 = vmatprep.subr.mxu0 0.0
    %321 = vmatpush1.msra.mxu0 0.0
    %322 = vmatprep.subr.mxu0 0.0
    %323 = vmatpush1.msra.mxu0 0.0
    %324 = vmatprep.subr.mxu0 0.0
    %325 = vmatpush1.msra.mxu0 0.0
    %326 = vmatprep.mubr.f32.mxu0 0.0
    %327 = vmatmul.mubr.f32.gmra.mrb[0].mxu0 %v260
    %v328 = vpop.f32.mrb[0].mxu0
    %v329 = vadd.f32 0.0, %v328
    %v330 = vpop.f32.mrb[0].mxu0
    %331 = vdwg.mxu0
    %v332 = vld [vmem:[#allocation2] sm:$0xff]
    %v333 = vadd.f32 %v329, %v332
    %v334 = vtanh.pop %v333
    %335 = vst.msk [vmem:[#allocation6] sm:$0xff] %vm172, %v334
    %v336 = vld [vmem:[%s3] sm:$0xff]
    %v337 = vld [vmem:[%s3 + $0x8] sm:$0xff]
    %v338 = vld [vmem:[%s3 + $0x10] sm:$0xff]
    %v339 = vld [vmem:[%s3 + $0x18] sm:$0xff]
    %v341 = vsel %vm172, %v334, 0
    %343 = vmatprep.subr.mxu0 0.0
    %344 = vmatpush1.msra.mxu0 %v336
    %345 = vmatprep.subr.mxu0 0.0
    %346 = vmatpush1.msra.mxu0 %v337
    %347 = vmatprep.subr.mxu0 0.0
    %348 = vmatpush1.msra.mxu0 %v338
    %349 = vmatprep.subr.mxu0 0.0
    %350 = vmatpush1.msra.mxu0 %v339
    %351 = vmatprep.subr.mxu0 0.0
    %352 = vmatpush1.msra.mxu0 0.0
    %353 = vmatprep.subr.mxu0 0.0
    %354 = vmatpush1.msra.mxu0 0.0
    %355 = vmatprep.subr.mxu0 0.0
    %356 = vmatpush1.msra.mxu0 0.0
    %357 = vmatprep.subr.mxu0 0.0
    %358 = vmatpush1.msra.mxu0 0.0
    %359 = vmatprep.subr.mxu0 0.0
    %360 = vmatpush1.msra.mxu0 0.0
    %361 = vmatprep.subr.mxu0 0.0
    %362 = vmatpush1.msra.mxu0 0.0
    %363 = vmatprep.subr.mxu0 0.0
    %364 = vmatpush1.msra.mxu0 0.0
    %365 = vmatprep.subr.mxu0 0.0
    %366 = vmatpush1.msra.mxu0 0.0
    %367 = vmatprep.subr.mxu0 0.0
    %368 = vmatpush1.msra.mxu0 0.0
    %369 = vmatprep.subr.mxu0 0.0
    %370 = vmatpush1.msra.mxu0 0.0
    %371 = vmatprep.subr.mxu0 0.0
    %372 = vmatpush1.msra.mxu0 0.0
    %373 = vmatprep.subr.mxu0 0.0
    %374 = vmatpush1.msra.mxu0 0.0
    %375 = vmatprep.subr.mxu0 0.0
    %376 = vmatpush1.msra.mxu0 0.0
    %377 = vmatprep.subr.mxu0 0.0
    %378 = vmatpush1.msra.mxu0 0.0
    %379 = vmatprep.subr.mxu0 0.0
    %380 = vmatpush1.msra.mxu0 0.0
    %381 = vmatprep.subr.mxu0 0.0
    %382 = vmatpush1.msra.mxu0 0.0
    %383 = vmatprep.subr.mxu0 0.0
    %384 = vmatpush1.msra.mxu0 0.0
    %385 = vmatprep.subr.mxu0 0.0
    %386 = vmatpush1.msra.mxu0 0.0
    %387 = vmatprep.subr.mxu0 0.0
    %388 = vmatpush1.msra.mxu0 0.0
    %389 = vmatprep.subr.mxu0 0.0
    %390 = vmatpush1.msra.mxu0 0.0
    %391 = vmatprep.subr.mxu0 0.0
    %392 = vmatpush1.msra.mxu0 0.0
    %393 = vmatprep.subr.mxu0 0.0
    %394 = vmatpush1.msra.mxu0 0.0
    %395 = vmatprep.subr.mxu0 0.0
    %396 = vmatpush1.msra.mxu0 0.0
    %397 = vmatprep.subr.mxu0 0.0
    %398 = vmatpush1.msra.mxu0 0.0
    %399 = vmatprep.subr.mxu0 0.0
    %400 = vmatpush1.msra.mxu0 0.0
    %401 = vmatprep.subr.mxu0 0.0
    %402 = vmatpush1.msra.mxu0 0.0
    %403 = vmatprep.subr.mxu0 0.0
    %404 = vmatpush1.msra.mxu0 0.0
    %405 = vmatprep.subr.mxu0 0.0
    %406 = vmatpush1.msra.mxu0 0.0
    %407 = vmatprep.mubr.f32.mxu0 0.0
    %408 = vmatmul.mubr.f32.gmra.mrb[0].mxu0 %v341
    %v409 = vpop.f32.mrb[0].mxu0
    %v410 = vadd.f32 0.0, %v409
    %v411 = vpop.f32.mrb[0].mxu0
    %412 = vdwg.mxu0
    %414 = vrot.lane.b32.xlu0 %v410, 32
    %v415 = vpop.permute.xlu0 %414
    %v417 = vadd.f32 %v329, %v415
    %v418 = vld [vmem:[#allocation3] sm:$0xff]
    %420 = vrot.lane.b32.xlu0 %v418, 32
    %v421 = vpop.permute.xlu0 %420
    %v423 = vadd.f32 %v417, %v421
    %425 = vrot.lane.b32.xlu0 %v423, 96
    %v426 = vpop.permute.xlu0 %425
    %s428 = scalar_lea.vmem [#allocation5], 8
    %429 = vst.msk [vmem:[%s428] sm:$0xff] %vm172, %v426
    %v430 = vld [vmem:[%s2] sm:$0xff]
    %v431 = vld [vmem:[%s2 + $0x8] sm:$0xff]
    %v432 = vld [vmem:[%s2 + $0x10] sm:$0xff]
    %v433 = vld [vmem:[%s2 + $0x18] sm:$0xff]
    %v434 = vsel %vm172, %v426, 0
    %436 = vmatprep.subr.mxu0 0.0
    %437 = vmatpush1.msra.mxu0 %v430
    %438 = vmatprep.subr.mxu0 0.0
    %439 = vmatpush1.msra.mxu0 %v431
    %440 = vmatprep.subr.mxu0 0.0
    %441 = vmatpush1.msra.mxu0 %v432
    %442 = vmatprep.subr.mxu0 0.0
    %443 = vmatpush1.msra.mxu0 %v433
    %444 = vmatprep.subr.mxu0 0.0
    %445 = vmatpush1.msra.mxu0 0.0
    %446 = vmatprep.subr.mxu0 0.0
    %447 = vmatpush1.msra.mxu0 0.0
    %448 = vmatprep.subr.mxu0 0.0
    %449 = vmatpush1.msra.mxu0 0.0
    %450 = vmatprep.subr.mxu0 0.0
    %451 = vmatpush1.msra.mxu0 0.0
    %452 = vmatprep.subr.mxu0 0.0
    %453 = vmatpush1.msra.mxu0 0.0
    %454 = vmatprep.subr.mxu0 0.0
    %455 = vmatpush1.msra.mxu0 0.0
    %456 = vmatprep.subr.mxu0 0.0
    %457 = vmatpush1.msra.mxu0 0.0
    %458 = vmatprep.subr.mxu0 0.0
    %459 = vmatpush1.msra.mxu0 0.0
    %460 = vmatprep.subr.mxu0 0.0
    %461 = vmatpush1.msra.mxu0 0.0
    %462 = vmatprep.subr.mxu0 0.0
    %463 = vmatpush1.msra.mxu0 0.0
    %464 = vmatprep.subr.mxu0 0.0
    %465 = vmatpush1.msra.mxu0 0.0
    %466 = vmatprep.subr.mxu0 0.0
    %467 = vmatpush1.msra.mxu0 0.0
    %468 = vmatprep.subr.mxu0 0.0
    %469 = vmatpush1.msra.mxu0 0.0
    %470 = vmatprep.subr.mxu0 0.0
    %471 = vmatpush1.msra.mxu0 0.0
    %472 = vmatprep.subr.mxu0 0.0
    %473 = vmatpush1.msra.mxu0 0.0
    %474 = vmatprep.subr.mxu0 0.0
    %475 = vmatpush1.msra.mxu0 0.0
    %476 = vmatprep.subr.mxu0 0.0
    %477 = vmatpush1.msra.mxu0 0.0
    %478 = vmatprep.subr.mxu0 0.0
    %479 = vmatpush1.msra.mxu0 0.0
    %480 = vmatprep.subr.mxu0 0.0
    %481 = vmatpush1.msra.mxu0 0.0
    %482 = vmatprep.subr.mxu0 0.0
    %483 = vmatpush1.msra.mxu0 0.0
    %484 = vmatprep.subr.mxu0 0.0
    %485 = vmatpush1.msra.mxu0 0.0
    %486 = vmatprep.subr.mxu0 0.0
    %487 = vmatpush1.msra.mxu0 0.0
    %488 = vmatprep.subr.mxu0 0.0
    %489 = vmatpush1.msra.mxu0 0.0
    %490 = vmatprep.subr.mxu0 0.0
    %491 = vmatpush1.msra.mxu0 0.0
    %492 = vmatprep.subr.mxu0 0.0
    %493 = vmatpush1.msra.mxu0 0.0
    %494 = vmatprep.subr.mxu0 0.0
    %495 = vmatpush1.msra.mxu0 0.0
    %496 = vmatprep.subr.mxu0 0.0
    %497 = vmatpush1.msra.mxu0 0.0
    %498 = vmatprep.subr.mxu0 0.0
    %499 = vmatpush1.msra.mxu0 0.0
    %500 = vmatprep.mubr.f32.mxu0 0.0
    %501 = vmatmul.mubr.f32.gmra.mrb[0].mxu0 %v434
    %v502 = vpop.f32.mrb[0].mxu0
    %v503 = vadd.f32 0.0, %v502
    %v504 = vpop.f32.mrb[0].mxu0
    %505 = vdwg.mxu0
    %s506 = scalar_lea.vmem [#allocation2], 8
    %v507 = vld [vmem:[%s506] sm:$0xff]
    %v508 = vadd.f32 %v503, %v507
    %v509 = vtanh.pop %v508
    %s510 = scalar_lea.vmem [#allocation6], 8
    %511 = vst.msk [vmem:[%s510] sm:$0xff] %vm172, %v509
    %v512 = vld [vmem:[%s3] sm:$0xff]
    %v513 = vld [vmem:[%s3 + $0x8] sm:$0xff]
    %v514 = vld [vmem:[%s3 + $0x10] sm:$0xff]
    %v515 = vld [vmem:[%s3 + $0x18] sm:$0xff]
    %v517 = vsel %vm172, %v509, 0
    %519 = vmatprep.subr.mxu0 0.0
    %520 = vmatpush1.msra.mxu0 %v512
    %521 = vmatprep.subr.mxu0 0.0
    %522 = vmatpush1.msra.mxu0 %v513
    %523 = vmatprep.subr.mxu0 0.0
    %524 = vmatpush1.msra.mxu0 %v514
    %525 = vmatprep.subr.mxu0 0.0
    %526 = vmatpush1.msra.mxu0 %v515
    %527 = vmatprep.subr.mxu0 0.0
    %528 = vmatpush1.msra.mxu0 0.0
    %529 = vmatprep.subr.mxu0 0.0
    %530 = vmatpush1.msra.mxu0 0.0
    %531 = vmatprep.subr.mxu0 0.0
    %532 = vmatpush1.msra.mxu0 0.0
    %533 = vmatprep.subr.mxu0 0.0
    %534 = vmatpush1.msra.mxu0 0.0
    %535 = vmatprep.subr.mxu0 0.0
    %536 = vmatpush1.msra.mxu0 0.0
    %537 = vmatprep.subr.mxu0 0.0
    %538 = vmatpush1.msra.mxu0 0.0
    %539 = vmatprep.subr.mxu0 0.0
    %540 = vmatpush1.msra.mxu0 0.0
    %541 = vmatprep.subr.mxu0 0.0
    %542 = vmatpush1.msra.mxu0 0.0
    %543 = vmatprep.subr.mxu0 0.0
    %544 = vmatpush1.msra.mxu0 0.0
    %545 = vmatprep.subr.mxu0 0.0
    %546 = vmatpush1.msra.mxu0 0.0
    %547 = vmatprep.subr.mxu0 0.0
    %548 = vmatpush1.msra.mxu0 0.0
    %549 = vmatprep.subr.mxu0 0.0
    %550 = vmatpush1.msra.mxu0 0.0
    %551 = vmatprep.subr.mxu0 0.0
    %552 = vmatpush1.msra.mxu0 0.0
    %553 = vmatprep.subr.mxu0 0.0
    %554 = vmatpush1.msra.mxu0 0.0
    %555 = vmatprep.subr.mxu0 0.0
    %556 = vmatpush1.msra.mxu0 0.0
    %557 = vmatprep.subr.mxu0 0.0
    %558 = vmatpush1.msra.mxu0 0.0
    %559 = vmatprep.subr.mxu0 0.0
    %560 = vmatpush1.msra.mxu0 0.0
    %561 = vmatprep.subr.mxu0 0.0
    %562 = vmatpush1.msra.mxu0 0.0
    %563 = vmatprep.subr.mxu0 0.0
    %564 = vmatpush1.msra.mxu0 0.0
    %565 = vmatprep.subr.mxu0 0.0
    %566 = vmatpush1.msra.mxu0 0.0
    %567 = vmatprep.subr.mxu0 0.0
    %568 = vmatpush1.msra.mxu0 0.0
    %569 = vmatprep.subr.mxu0 0.0
    %570 = vmatpush1.msra.mxu0 0.0
    %571 = vmatprep.subr.mxu0 0.0
    %572 = vmatpush1.msra.mxu0 0.0
    %573 = vmatprep.subr.mxu0 0.0
    %574 = vmatpush1.msra.mxu0 0.0
    %575 = vmatprep.subr.mxu0 0.0
    %576 = vmatpush1.msra.mxu0 0.0
    %577 = vmatprep.subr.mxu0 0.0
    %578 = vmatpush1.msra.mxu0 0.0
    %579 = vmatprep.subr.mxu0 0.0
    %580 = vmatpush1.msra.mxu0 0.0
    %581 = vmatprep.subr.mxu0 0.0
    %582 = vmatpush1.msra.mxu0 0.0
    %583 = vmatprep.mubr.f32.mxu0 0.0
    %584 = vmatmul.mubr.f32.gmra.mrb[0].mxu0 %v517
    %v585 = vpop.f32.mrb[0].mxu0
    %v586 = vadd.f32 0.0, %v585
    %v587 = vpop.f32.mrb[0].mxu0
    %588 = vdwg.mxu0
    %590 = vrot.lane.b32.xlu0 %v586, 32
    %v591 = vpop.permute.xlu0 %590
    %v593 = vadd.f32 %v503, %v591
    %s594 = scalar_lea.vmem [#allocation3], 8
    %v595 = vld [vmem:[%s594] sm:$0xff]
    %597 = vrot.lane.b32.xlu0 %v595, 32
    %v598 = vpop.permute.xlu0 %597
    %v600 = vadd.f32 %v593, %v598
    %602 = vrot.lane.b32.xlu0 %v600, 96
    %v603 = vpop.permute.xlu0 %602
    %s605 = scalar_lea.vmem [#allocation5], 16
    %606 = vst.msk [vmem:[%s605] sm:$0xff] %vm172, %v603
    %v607 = vld [vmem:[%s2] sm:$0xff]
    %v608 = vld [vmem:[%s2 + $0x8] sm:$0xff]
    %v609 = vld [vmem:[%s2 + $0x10] sm:$0xff]
    %v610 = vld [vmem:[%s2 + $0x18] sm:$0xff]
    %v611 = vsel %vm172, %v603, 0
    %613 = vmatprep.subr.mxu0 0.0
    %614 = vmatpush1.msra.mxu0 %v607
    %615 = vmatprep.subr.mxu0 0.0
    %616 = vmatpush1.msra.mxu0 %v608
    %617 = vmatprep.subr.mxu0 0.0
    %618 = vmatpush1.msra.mxu0 %v609
    %619 = vmatprep.subr.mxu0 0.0
    %620 = vmatpush1.msra.mxu0 %v610
    %621 = vmatprep.subr.mxu0 0.0
    %622 = vmatpush1.msra.mxu0 0.0
    %623 = vmatprep.subr.mxu0 0.0
    %624 = vmatpush1.msra.mxu0 0.0
    %625 = vmatprep.subr.mxu0 0.0
    %626 = vmatpush1.msra.mxu0 0.0
    %627 = vmatprep.subr.mxu0 0.0
    %628 = vmatpush1.msra.mxu0 0.0
    %629 = vmatprep.subr.mxu0 0.0
    %630 = vmatpush1.msra.mxu0 0.0
    %631 = vmatprep.subr.mxu0 0.0
    %632 = vmatpush1.msra.mxu0 0.0
    %633 = vmatprep.subr.mxu0 0.0
    %634 = vmatpush1.msra.mxu0 0.0
    %635 = vmatprep.subr.mxu0 0.0
    %636 = vmatpush1.msra.mxu0 0.0
    %637 = vmatprep.subr.mxu0 0.0
    %638 = vmatpush1.msra.mxu0 0.0
    %639 = vmatprep.subr.mxu0 0.0
    %640 = vmatpush1.msra.mxu0 0.0
    %641 = vmatprep.subr.mxu0 0.0
    %642 = vmatpush1.msra.mxu0 0.0
    %643 = vmatprep.subr.mxu0 0.0
    %644 = vmatpush1.msra.mxu0 0.0
    %645 = vmatprep.subr.mxu0 0.0
    %646 = vmatpush1.msra.mxu0 0.0
    %647 = vmatprep.subr.mxu0 0.0
    %648 = vmatpush1.msra.mxu0 0.0
    %649 = vmatprep.subr.mxu0 0.0
    %650 = vmatpush1.msra.mxu0 0.0
    %651 = vmatprep.subr.mxu0 0.0
    %652 = vmatpush1.msra.mxu0 0.0
    %653 = vmatprep.subr.mxu0 0.0
    %654 = vmatpush1.msra.mxu0 0.0
    %655 = vmatprep.subr.mxu0 0.0
    %656 = vmatpush1.msra.mxu0 0.0
    %657 = vmatprep.subr.mxu0 0.0
    %658 = vmatpush1.msra.mxu0 0.0
    %659 = vmatprep.subr.mxu0 0.0
    %660 = vmatpush1.msra.mxu0 0.0
    %661 = vmatprep.subr.mxu0 0.0
    %662 = vmatpush1.msra.mxu0 0.0
    %663 = vmatprep.subr.mxu0 0.0
    %664 = vmatpush1.msra.mxu0 0.0
    %665 = vmatprep.subr.mxu0 0.0
    %666 = vmatpush1.msra.mxu0 0.0
    %667 = vmatprep.subr.mxu0 0.0
    %668 = vmatpush1.msra.mxu0 0.0
    %669 = vmatprep.subr.mxu0 0.0
    %670 = vmatpush1.msra.mxu0 0.0
    %671 = vmatprep.subr.mxu0 0.0
    %672 = vmatpush1.msra.mxu0 0.0
    %673 = vmatprep.subr.mxu0 0.0
    %674 = vmatpush1.msra.mxu0 0.0
    %675 = vmatprep.subr.mxu0 0.0
    %676 = vmatpush1.msra.mxu0 0.0
    %677 = vmatprep.mubr.f32.mxu0 0.0
    %678 = vmatmul.mubr.f32.gmra.mrb[0].mxu0 %v611
    %v679 = vpop.f32.mrb[0].mxu0
    %v680 = vadd.f32 0.0, %v679
    %v681 = vpop.f32.mrb[0].mxu0
    %682 = vdwg.mxu0
    %s683 = scalar_lea.vmem [#allocation2], 16
    %v684 = vld [vmem:[%s683] sm:$0xff]
    %v685 = vadd.f32 %v680, %v684
    %v686 = vtanh.pop %v685
    %s687 = scalar_lea.vmem [#allocation6], 16
    %688 = vst.msk [vmem:[%s687] sm:$0xff] %vm172, %v686
    %v689 = vld [vmem:[%s3] sm:$0xff]
    %v690 = vld [vmem:[%s3 + $0x8] sm:$0xff]
    %v691 = vld [vmem:[%s3 + $0x10] sm:$0xff]
    %v692 = vld [vmem:[%s3 + $0x18] sm:$0xff]
    %v694 = vsel %vm172, %v686, 0
    %696 = vmatprep.subr.mxu0 0.0
    %697 = vmatpush1.msra.mxu0 %v689
    %698 = vmatprep.subr.mxu0 0.0
    %699 = vmatpush1.msra.mxu0 %v690
    %700 = vmatprep.subr.mxu0 0.0
    %701 = vmatpush1.msra.mxu0 %v691
    %702 = vmatprep.subr.mxu0 0.0
    %703 = vmatpush1.msra.mxu0 %v692
    %704 = vmatprep.subr.mxu0 0.0
    %705 = vmatpush1.msra.mxu0 0.0
    %706 = vmatprep.subr.mxu0 0.0
    %707 = vmatpush1.msra.mxu0 0.0
    %708 = vmatprep.subr.mxu0 0.0
    %709 = vmatpush1.msra.mxu0 0.0
    %710 = vmatprep.subr.mxu0 0.0
    %711 = vmatpush1.msra.mxu0 0.0
    %712 = vmatprep.subr.mxu0 0.0
    %713 = vmatpush1.msra.mxu0 0.0
    %714 = vmatprep.subr.mxu0 0.0
    %715 = vmatpush1.msra.mxu0 0.0
    %716 = vmatprep.subr.mxu0 0.0
    %717 = vmatpush1.msra.mxu0 0.0
    %718 = vmatprep.subr.mxu0 0.0
    %719 = vmatpush1.msra.mxu0 0.0
    %720 = vmatprep.subr.mxu0 0.0
    %721 = vmatpush1.msra.mxu0 0.0
    %722 = vmatprep.subr.mxu0 0.0
    %723 = vmatpush1.msra.mxu0 0.0
    %724 = vmatprep.subr.mxu0 0.0
    %725 = vmatpush1.msra.mxu0 0.0
    %726 = vmatprep.subr.mxu0 0.0
    %727 = vmatpush1.msra.mxu0 0.0
    %728 = vmatprep.subr.mxu0 0.0
    %729 = vmatpush1.msra.mxu0 0.0
    %730 = vmatprep.subr.mxu0 0.0
    %731 = vmatpush1.msra.mxu0 0.0
    %732 = vmatprep.subr.mxu0 0.0
    %733 = vmatpush1.msra.mxu0 0.0
    %734 = vmatprep.subr.mxu0 0.0
    %735 = vmatpush1.msra.mxu0 0.0
    %736 = vmatprep.subr.mxu0 0.0
    %737 = vmatpush1.msra.mxu0 0.0
    %738 = vmatprep.subr.mxu0 0.0
    %739 = vmatpush1.msra.mxu0 0.0
    %740 = vmatprep.subr.mxu0 0.0
    %741 = vmatpush1.msra.mxu0 0.0
    %742 = vmatprep.subr.mxu0 0.0
    %743 = vmatpush1.msra.mxu0 0.0
    %744 = vmatprep.subr.mxu0 0.0
    %745 = vmatpush1.msra.mxu0 0.0
    %746 = vmatprep.subr.mxu0 0.0
    %747 = vmatpush1.msra.mxu0 0.0
    %748 = vmatprep.subr.mxu0 0.0
    %749 = vmatpush1.msra.mxu0 0.0
    %750 = vmatprep.subr.mxu0 0.0
    %751 = vmatpush1.msra.mxu0 0.0
    %752 = vmatprep.subr.mxu0 0.0
    %753 = vmatpush1.msra.mxu0 0.0
    %754 = vmatprep.subr.mxu0 0.0
    %755 = vmatpush1.msra.mxu0 0.0
    %756 = vmatprep.subr.mxu0 0.0
    %757 = vmatpush1.msra.mxu0 0.0
    %758 = vmatprep.subr.mxu0 0.0
    %759 = vmatpush1.msra.mxu0 0.0
    %760 = vmatprep.mubr.f32.mxu0 0.0
    %761 = vmatmul.mubr.f32.gmra.mrb[0].mxu0 %v694
    %v762 = vpop.f32.mrb[0].mxu0
    %v763 = vadd.f32 0.0, %v762
    %v764 = vpop.f32.mrb[0].mxu0
    %765 = vdwg.mxu0
    %767 = vrot.lane.b32.xlu0 %v763, 32
    %v768 = vpop.permute.xlu0 %767
    %v770 = vadd.f32 %v680, %v768
    %s771 = scalar_lea.vmem [#allocation3], 16
    %v772 = vld [vmem:[%s771] sm:$0xff]
    %774 = vrot.lane.b32.xlu0 %v772, 32
    %v775 = vpop.permute.xlu0 %774
    %v777 = vadd.f32 %v770, %v775
    %779 = vrot.lane.b32.xlu0 %v777, 96
    %v780 = vpop.permute.xlu0 %779
    %s782 = scalar_lea.vmem [#allocation5], 24
    %783 = vst.msk [vmem:[%s782] sm:$0xff] %vm172, %v780
    %v784 = vld [vmem:[%s2] sm:$0xff]
    %v785 = vld [vmem:[%s2 + $0x8] sm:$0xff]
    %v786 = vld [vmem:[%s2 + $0x10] sm:$0xff]
    %v787 = vld [vmem:[%s2 + $0x18] sm:$0xff]
    %v788 = vsel %vm172, %v780, 0
    %790 = vmatprep.subr.mxu0 0.0
    %791 = vmatpush1.msra.mxu0 %v784
    %792 = vmatprep.subr.mxu0 0.0
    %793 = vmatpush1.msra.mxu0 %v785
    %794 = vmatprep.subr.mxu0 0.0
    %795 = vmatpush1.msra.mxu0 %v786
    %796 = vmatprep.subr.mxu0 0.0
    %797 = vmatpush1.msra.mxu0 %v787
    %798 = vmatprep.subr.mxu0 0.0
    %799 = vmatpush1.msra.mxu0 0.0
    %800 = vmatprep.subr.mxu0 0.0
    %801 = vmatpush1.msra.mxu0 0.0
    %802 = vmatprep.subr.mxu0 0.0
    %803 = vmatpush1.msra.mxu0 0.0
    %804 = vmatprep.subr.mxu0 0.0
    %805 = vmatpush1.msra.mxu0 0.0
    %806 = vmatprep.subr.mxu0 0.0
    %807 = vmatpush1.msra.mxu0 0.0
    %808 = vmatprep.subr.mxu0 0.0
    %809 = vmatpush1.msra.mxu0 0.0
    %810 = vmatprep.subr.mxu0 0.0
    %811 = vmatpush1.msra.mxu0 0.0
    %812 = vmatprep.subr.mxu0 0.0
    %813 = vmatpush1.msra.mxu0 0.0
    %814 = vmatprep.subr.mxu0 0.0
    %815 = vmatpush1.msra.mxu0 0.0
    %816 = vmatprep.subr.mxu0 0.0
    %817 = vmatpush1.msra.mxu0 0.0
    %818 = vmatprep.subr.mxu0 0.0
    %819 = vmatpush1.msra.mxu0 0.0
    %820 = vmatprep.subr.mxu0 0.0
    %821 = vmatpush1.msra.mxu0 0.0
    %822 = vmatprep.subr.mxu0 0.0
    %823 = vmatpush1.msra.mxu0 0.0
    %824 = vmatprep.subr.mxu0 0.0
    %825 = vmatpush1.msra.mxu0 0.0
    %826 = vmatprep.subr.mxu0 0.0
    %827 = vmatpush1.msra.mxu0 0.0
    %828 = vmatprep.subr.mxu0 0.0
    %829 = vmatpush1.msra.mxu0 0.0
    %830 = vmatprep.subr.mxu0 0.0
    %831 = vmatpush1.msra.mxu0 0.0
    %832 = vmatprep.subr.mxu0 0.0
    %833 = vmatpush1.msra.mxu0 0.0
    %834 = vmatprep.subr.mxu0 0.0
    %835 = vmatpush1.msra.mxu0 0.0
    %836 = vmatprep.subr.mxu0 0.0
    %837 = vmatpush1.msra.mxu0 0.0
    %838 = vmatprep.subr.mxu0 0.0
    %839 = vmatpush1.msra.mxu0 0.0
    %840 = vmatprep.subr.mxu0 0.0
    %841 = vmatpush1.msra.mxu0 0.0
    %842 = vmatprep.subr.mxu0 0.0
    %843 = vmatpush1.msra.mxu0 0.0
    %844 = vmatprep.subr.mxu0 0.0
    %845 = vmatpush1.msra.mxu0 0.0
    %846 = vmatprep.subr.mxu0 0.0
    %847 = vmatpush1.msra.mxu0 0.0
    %848 = vmatprep.subr.mxu0 0.0
    %849 = vmatpush1.msra.mxu0 0.0
    %850 = vmatprep.subr.mxu0 0.0
    %851 = vmatpush1.msra.mxu0 0.0
    %852 = vmatprep.subr.mxu0 0.0
    %853 = vmatpush1.msra.mxu0 0.0
    %854 = vmatprep.mubr.f32.mxu0 0.0
    %855 = vmatmul.mubr.f32.gmra.mrb[0].mxu0 %v788
    %v856 = vpop.f32.mrb[0].mxu0
    %v857 = vadd.f32 0.0, %v856
    %v858 = vpop.f32.mrb[0].mxu0
    %859 = vdwg.mxu0
    %s860 = scalar_lea.vmem [#allocation2], 24
    %v861 = vld [vmem:[%s860] sm:$0xff]
    %v862 = vadd.f32 %v857, %v861
    %v863 = vtanh.pop %v862
    %s864 = scalar_lea.vmem [#allocation6], 24
    %865 = vst.msk [vmem:[%s864] sm:$0xff] %vm172, %v863
    %v866 = vld [vmem:[%s3] sm:$0xff]
    %v867 = vld [vmem:[%s3 + $0x8] sm:$0xff]
    %v868 = vld [vmem:[%s3 + $0x10] sm:$0xff]
    %v869 = vld [vmem:[%s3 + $0x18] sm:$0xff]
    %v871 = vsel %vm172, %v863, 0
    %873 = vmatprep.subr.mxu0 0.0
    %874 = vmatpush1.msra.mxu0 %v866
    %875 = vmatprep.subr.mxu0 0.0
    %876 = vmatpush1.msra.mxu0 %v867
    %877 = vmatprep.subr.mxu0 0.0
    %878 = vmatpush1.msra.mxu0 %v868
    %879 = vmatprep.subr.mxu0 0.0
    %880 = vmatpush1.msra.mxu0 %v869
    %881 = vmatprep.subr.mxu0 0.0
    %882 = vmatpush1.msra.mxu0 0.0
    %883 = vmatprep.subr.mxu0 0.0
    %884 = vmatpush1.msra.mxu0 0.0
    %885 = vmatprep.subr.mxu0 0.0
    %886 = vmatpush1.msra.mxu0 0.0
    %887 = vmatprep.subr.mxu0 0.0
    %888 = vmatpush1.msra.mxu0 0.0
    %889 = vmatprep.subr.mxu0 0.0
    %890 = vmatpush1.msra.mxu0 0.0
    %891 = vmatprep.subr.mxu0 0.0
    %892 = vmatpush1.msra.mxu0 0.0
    %893 = vmatprep.subr.mxu0 0.0
    %894 = vmatpush1.msra.mxu0 0.0
    %895 = vmatprep.subr.mxu0 0.0
    %896 = vmatpush1.msra.mxu0 0.0
    %897 = vmatprep.subr.mxu0 0.0
    %898 = vmatpush1.msra.mxu0 0.0
    %899 = vmatprep.subr.mxu0 0.0
    %900 = vmatpush1.msra.mxu0 0.0
    %901 = vmatprep.subr.mxu0 0.0
    %902 = vmatpush1.msra.mxu0 0.0
    %903 = vmatprep.subr.mxu0 0.0
    %904 = vmatpush1.msra.mxu0 0.0
    %905 = vmatprep.subr.mxu0 0.0
    %906 = vmatpush1.msra.mxu0 0.0
    %907 = vmatprep.subr.mxu0 0.0
    %908 = vmatpush1.msra.mxu0 0.0
    %909 = vmatprep.subr.mxu0 0.0
    %910 = vmatpush1.msra.mxu0 0.0
    %911 = vmatprep.subr.mxu0 0.0
    %912 = vmatpush1.msra.mxu0 0.0
    %913 = vmatprep.subr.mxu0 0.0
    %914 = vmatpush1.msra.mxu0 0.0
    %915 = vmatprep.subr.mxu0 0.0
    %916 = vmatpush1.msra.mxu0 0.0
    %917 = vmatprep.subr.mxu0 0.0
    %918 = vmatpush1.msra.mxu0 0.0
    %919 = vmatprep.subr.mxu0 0.0
    %920 = vmatpush1.msra.mxu0 0.0
    %921 = vmatprep.subr.mxu0 0.0
    %922 = vmatpush1.msra.mxu0 0.0
    %923 = vmatprep.subr.mxu0 0.0
    %924 = vmatpush1.msra.mxu0 0.0
    %925 = vmatprep.subr.mxu0 0.0
    %926 = vmatpush1.msra.mxu0 0.0
    %927 = vmatprep.subr.mxu0 0.0
    %928 = vmatpush1.msra.mxu0 0.0
    %929 = vmatprep.subr.mxu0 0.0
    %930 = vmatpush1.msra.mxu0 0.0
    %931 = vmatprep.subr.mxu0 0.0
    %932 = vmatpush1.msra.mxu0 0.0
    %933 = vmatprep.subr.mxu0 0.0
    %934 = vmatpush1.msra.mxu0 0.0
    %935 = vmatprep.subr.mxu0 0.0
    %936 = vmatpush1.msra.mxu0 0.0
    %937 = vmatprep.mubr.f32.mxu0 0.0
    %938 = vmatmul.mubr.f32.gmra.mrb[0].mxu0 %v871
    %v939 = vpop.f32.mrb[0].mxu0
    %v940 = vadd.f32 0.0, %v939
    %v941 = vpop.f32.mrb[0].mxu0
    %942 = vdwg.mxu0
    %944 = vrot.lane.b32.xlu0 %v940, 32
    %v945 = vpop.permute.xlu0 %944
    %v947 = vadd.f32 %v857, %v945
    %s948 = scalar_lea.vmem [#allocation3], 24
    %v949 = vld [vmem:[%s948] sm:$0xff]
    %951 = vrot.lane.b32.xlu0 %v949, 32
    %v952 = vpop.permute.xlu0 %951
    %v954 = vadd.f32 %v947, %v952
    %956 = vrot.lane.b32.xlu0 %v954, 96
    %v957 = vpop.permute.xlu0 %956
    %s959 = scalar_lea.vmem [#allocation5], 32
    %960 = vst.msk [vmem:[%s959] sm:$0xff] %vm172, %v957
    %v961 = vld [vmem:[%s2] sm:$0xff]
    %v962 = vld [vmem:[%s2 + $0x8] sm:$0xff]
    %v963 = vld [vmem:[%s2 + $0x10] sm:$0xff]
    %v964 = vld [vmem:[%s2 + $0x18] sm:$0xff]
    %v965 = vsel %vm172, %v957, 0
    %967 = vmatprep.subr.mxu0 0.0
    %968 = vmatpush1.msra.mxu0 %v961
    %969 = vmatprep.subr.mxu0 0.0
    %970 = vmatpush1.msra.mxu0 %v962
    %971 = vmatprep.subr.mxu0 0.0
    %972 = vmatpush1.msra.mxu0 %v963
    %973 = vmatprep.subr.mxu0 0.0
    %974 = vmatpush1.msra.mxu0 %v964
    %975 = vmatprep.subr.mxu0 0.0
    %976 = vmatpush1.msra.mxu0 0.0
    %977 = vmatprep.subr.mxu0 0.0
    %978 = vmatpush1.msra.mxu0 0.0
    %979 = vmatprep.subr.mxu0 0.0
    %980 = vmatpush1.msra.mxu0 0.0
    %981 = vmatprep.subr.mxu0 0.0
    %982 = vmatpush1.msra.mxu0 0.0
    %983 = vmatprep.subr.mxu0 0.0
    %984 = vmatpush1.msra.mxu0 0.0
    %985 = vmatprep.subr.mxu0 0.0
    %986 = vmatpush1.msra.mxu0 0.0
    %987 = vmatprep.subr.mxu0 0.0
    %988 = vmatpush1.msra.mxu0 0.0
    %989 = vmatprep.subr.mxu0 0.0
    %990 = vmatpush1.msra.mxu0 0.0
    %991 = vmatprep.subr.mxu0 0.0
    %992 = vmatpush1.msra.mxu0 0.0
    %993 = vmatprep.subr.mxu0 0.0
    %994 = vmatpush1.msra.mxu0 0.0
    %995 = vmatprep.subr.mxu0 0.0
    %996 = vmatpush1.msra.mxu0 0.0
    %997 = vmatprep.subr.mxu0 0.0
    %998 = vmatpush1.msra.mxu0 0.0
    %999 = vmatprep.subr.mxu0 0.0
    %1000 = vmatpush1.msra.mxu0 0.0
    %1001 = vmatprep.subr.mxu0 0.0
    %1002 = vmatpush1.msra.mxu0 0.0
    %1003 = vmatprep.subr.mxu0 0.0
    %1004 = vmatpush1.msra.mxu0 0.0
    %1005 = vmatprep.subr.mxu0 0.0
    %1006 = vmatpush1.msra.mxu0 0.0
    %1007 = vmatprep.subr.mxu0 0.0
    %1008 = vmatpush1.msra.mxu0 0.0
    %1009 = vmatprep.subr.mxu0 0.0
    %1010 = vmatpush1.msra.mxu0 0.0
    %1011 = vmatprep.subr.mxu0 0.0
    %1012 = vmatpush1.msra.mxu0 0.0
    %1013 = vmatprep.subr.mxu0 0.0
    %1014 = vmatpush1.msra.mxu0 0.0
    %1015 = vmatprep.subr.mxu0 0.0
    %1016 = vmatpush1.msra.mxu0 0.0
    %1017 = vmatprep.subr.mxu0 0.0
    %1018 = vmatpush1.msra.mxu0 0.0
    %1019 = vmatprep.subr.mxu0 0.0
    %1020 = vmatpush1.msra.mxu0 0.0
    %1021 = vmatprep.subr.mxu0 0.0
    %1022 = vmatpush1.msra.mxu0 0.0
    %1023 = vmatprep.subr.mxu0 0.0
    %1024 = vmatpush1.msra.mxu0 0.0
    %1025 = vmatprep.subr.mxu0 0.0
    %1026 = vmatpush1.msra.mxu0 0.0
    %1027 = vmatprep.subr.mxu0 0.0
    %1028 = vmatpush1.msra.mxu0 0.0
    %1029 = vmatprep.subr.mxu0 0.0
    %1030 = vmatpush1.msra.mxu0 0.0
    %1031 = vmatprep.mubr.f32.mxu0 0.0
    %1032 = vmatmul.mubr.f32.gmra.mrb[0].mxu0 %v965
    %v1033 = vpop.f32.mrb[0].mxu0
    %v1034 = vadd.f32 0.0, %v1033
    %v1035 = vpop.f32.mrb[0].mxu0
    %1036 = vdwg.mxu0
    %s1037 = scalar_lea.vmem [#allocation2], 32
    %v1038 = vld [vmem:[%s1037] sm:$0xff]
    %v1039 = vadd.f32 %v1034, %v1038
    %v1040 = vtanh.pop %v1039
    %s1041 = scalar_lea.vmem [#allocation6], 32
    %1042 = vst.msk [vmem:[%s1041] sm:$0xff] %vm172, %v1040
    %v1043 = vld [vmem:[%s3] sm:$0xff]
    %v1044 = vld [vmem:[%s3 + $0x8] sm:$0xff]
    %v1045 = vld [vmem:[%s3 + $0x10] sm:$0xff]
    %v1046 = vld [vmem:[%s3 + $0x18] sm:$0xff]
    %v1048 = vsel %vm172, %v1040, 0
    %1050 = vmatprep.subr.mxu0 0.0
    %1051 = vmatpush1.msra.mxu0 %v1043
    %1052 = vmatprep.subr.mxu0 0.0
    %1053 = vmatpush1.msra.mxu0 %v1044
    %1054 = vmatprep.subr.mxu0 0.0
    %1055 = vmatpush1.msra.mxu0 %v1045
    %1056 = vmatprep.subr.mxu0 0.0
    %1057 = vmatpush1.msra.mxu0 %v1046
    %1058 = vmatprep.subr.mxu0 0.0
    %1059 = vmatpush1.msra.mxu0 0.0
    %1060 = vmatprep.subr.mxu0 0.0
    %1061 = vmatpush1.msra.mxu0 0.0
    %1062 = vmatprep.subr.mxu0 0.0
    %1063 = vmatpush1.msra.mxu0 0.0
    %1064 = vmatprep.subr.mxu0 0.0
    %1065 = vmatpush1.msra.mxu0 0.0
    %1066 = vmatprep.subr.mxu0 0.0
    %1067 = vmatpush1.msra.mxu0 0.0
    %1068 = vmatprep.subr.mxu0 0.0
    %1069 = vmatpush1.msra.mxu0 0.0
    %1070 = vmatprep.subr.mxu0 0.0
    %1071 = vmatpush1.msra.mxu0 0.0
    %1072 = vmatprep.subr.mxu0 0.0
    %1073 = vmatpush1.msra.mxu0 0.0
    %1074 = vmatprep.subr.mxu0 0.0
    %1075 = vmatpush1.msra.mxu0 0.0
    %1076 = vmatprep.subr.mxu0 0.0
    %1077 = vmatpush1.msra.mxu0 0.0
    %1078 = vmatprep.subr.mxu0 0.0
    %1079 = vmatpush1.msra.mxu0 0.0
    %1080 = vmatprep.subr.mxu0 0.0
    %1081 = vmatpush1.msra.mxu0 0.0
    %1082 = vmatprep.subr.mxu0 0.0
    %1083 = vmatpush1.msra.mxu0 0.0
    %1084 = vmatprep.subr.mxu0 0.0
    %1085 = vmatpush1.msra.mxu0 0.0
    %1086 = vmatprep.subr.mxu0 0.0
    %1087 = vmatpush1.msra.mxu0 0.0
    %1088 = vmatprep.subr.mxu0 0.0
    %1089 = vmatpush1.msra.mxu0 0.0
    %1090 = vmatprep.subr.mxu0 0.0
    %1091 = vmatpush1.msra.mxu0 0.0
    %1092 = vmatprep.subr.mxu0 0.0
    %1093 = vmatpush1.msra.mxu0 0.0
    %1094 = vmatprep.subr.mxu0 0.0
    %1095 = vmatpush1.msra.mxu0 0.0
    %1096 = vmatprep.subr.mxu0 0.0
    %1097 = vmatpush1.msra.mxu0 0.0
    %1098 = vmatprep.subr.mxu0 0.0
    %1099 = vmatpush1.msra.mxu0 0.0
    %1100 = vmatprep.subr.mxu0 0.0
    %1101 = vmatpush1.msra.mxu0 0.0
    %1102 = vmatprep.subr.mxu0 0.0
    %1103 = vmatpush1.msra.mxu0 0.0
    %1104 = vmatprep.subr.mxu0 0.0
    %1105 = vmatpush1.msra.mxu0 0.0
    %1106 = vmatprep.subr.mxu0 0.0
    %1107 = vmatpush1.msra.mxu0 0.0
    %1108 = vmatprep.subr.mxu0 0.0
    %1109 = vmatpush1.msra.mxu0 0.0
    %1110 = vmatprep.subr.mxu0 0.0
    %1111 = vmatpush1.msra.mxu0 0.0
    %1112 = vmatprep.subr.mxu0 0.0
    %1113 = vmatpush1.msra.mxu0 0.0
    %1114 = vmatprep.mubr.f32.mxu0 0.0
    %1115 = vmatmul.mubr.f32.gmra.mrb[0].mxu0 %v1048
    %v1116 = vpop.f32.mrb[0].mxu0
    %v1117 = vadd.f32 0.0, %v1116
    %v1118 = vpop.f32.mrb[0].mxu0
    %1119 = vdwg.mxu0
    %1121 = vrot.lane.b32.xlu0 %v1117, 32
    %v1122 = vpop.permute.xlu0 %1121
    %v1124 = vadd.f32 %v1034, %v1122
    %s1125 = scalar_lea.vmem [#allocation3], 32
    %v1126 = vld [vmem:[%s1125] sm:$0xff]
    %1128 = vrot.lane.b32.xlu0 %v1126, 32
    %v1129 = vpop.permute.xlu0 %1128
    %v1131 = vadd.f32 %v1124, %v1129
    %1133 = vrot.lane.b32.xlu0 %v1131, 96
    %v1134 = vpop.permute.xlu0 %1133
    %s1136 = scalar_lea.vmem [#allocation5], 40
    %1137 = vst.msk [vmem:[%s1136] sm:$0xff] %vm172, %v1134
    %v1138 = vld [vmem:[%s2] sm:$0xff]
    %v1139 = vld [vmem:[%s2 + $0x8] sm:$0xff]
    %v1140 = vld [vmem:[%s2 + $0x10] sm:$0xff]
    %v1141 = vld [vmem:[%s2 + $0x18] sm:$0xff]
    %v1142 = vsel %vm172, %v1134, 0
    %1144 = vmatprep.subr.mxu0 0.0
    %1145 = vmatpush1.msra.mxu0 %v1138
    %1146 = vmatprep.subr.mxu0 0.0
    %1147 = vmatpush1.msra.mxu0 %v1139
    %1148 = vmatprep.subr.mxu0 0.0
    %1149 = vmatpush1.msra.mxu0 %v1140
    %1150 = vmatprep.subr.mxu0 0.0
    %1151 = vmatpush1.msra.mxu0 %v1141
    %1152 = vmatprep.subr.mxu0 0.0
    %1153 = vmatpush1.msra.mxu0 0.0
    %1154 = vmatprep.subr.mxu0 0.0
    %1155 = vmatpush1.msra.mxu0 0.0
    %1156 = vmatprep.subr.mxu0 0.0
    %1157 = vmatpush1.msra.mxu0 0.0
    %1158 = vmatprep.subr.mxu0 0.0
    %1159 = vmatpush1.msra.mxu0 0.0
    %1160 = vmatprep.subr.mxu0 0.0
    %1161 = vmatpush1.msra.mxu0 0.0
    %1162 = vmatprep.subr.mxu0 0.0
    %1163 = vmatpush1.msra.mxu0 0.0
    %1164 = vmatprep.subr.mxu0 0.0
    %1165 = vmatpush1.msra.mxu0 0.0
    %1166 = vmatprep.subr.mxu0 0.0
    %1167 = vmatpush1.msra.mxu0 0.0
    %1168 = vmatprep.subr.mxu0 0.0
    %1169 = vmatpush1.msra.mxu0 0.0
    %1170 = vmatprep.subr.mxu0 0.0
    %1171 = vmatpush1.msra.mxu0 0.0
    %1172 = vmatprep.subr.mxu0 0.0
    %1173 = vmatpush1.msra.mxu0 0.0
    %1174 = vmatprep.subr.mxu0 0.0
    %1175 = vmatpush1.msra.mxu0 0.0
    %1176 = vmatprep.subr.mxu0 0.0
    %1177 = vmatpush1.msra.mxu0 0.0
    %1178 = vmatprep.subr.mxu0 0.0
    %1179 = vmatpush1.msra.mxu0 0.0
    %1180 = vmatprep.subr.mxu0 0.0
    %1181 = vmatpush1.msra.mxu0 0.0
    %1182 = vmatprep.subr.mxu0 0.0
    %1183 = vmatpush1.msra.mxu0 0.0
    %1184 = vmatprep.subr.mxu0 0.0
    %1185 = vmatpush1.msra.mxu0 0.0
    %1186 = vmatprep.subr.mxu0 0.0
    %1187 = vmatpush1.msra.mxu0 0.0
    %1188 = vmatprep.subr.mxu0 0.0
    %1189 = vmatpush1.msra.mxu0 0.0
    %1190 = vmatprep.subr.mxu0 0.0
    %1191 = vmatpush1.msra.mxu0 0.0
    %1192 = vmatprep.subr.mxu0 0.0
    %1193 = vmatpush1.msra.mxu0 0.0
    %1194 = vmatprep.subr.mxu0 0.0
    %1195 = vmatpush1.msra.mxu0 0.0
    %1196 = vmatprep.subr.mxu0 0.0
    %1197 = vmatpush1.msra.mxu0 0.0
    %1198 = vmatprep.subr.mxu0 0.0
    %1199 = vmatpush1.msra.mxu0 0.0
    %1200 = vmatprep.subr.mxu0 0.0
    %1201 = vmatpush1.msra.mxu0 0.0
    %1202 = vmatprep.subr.mxu0 0.0
    %1203 = vmatpush1.msra.mxu0 0.0
    %1204 = vmatprep.subr.mxu0 0.0
    %1205 = vmatpush1.msra.mxu0 0.0
    %1206 = vmatprep.subr.mxu0 0.0
    %1207 = vmatpush1.msra.mxu0 0.0
    %1208 = vmatprep.mubr.f32.mxu0 0.0
    %1209 = vmatmul.mubr.f32.gmra.mrb[0].mxu0 %v1142
    %v1210 = vpop.f32.mrb[0].mxu0
    %v1211 = vadd.f32 0.0, %v1210
    %v1212 = vpop.f32.mrb[0].mxu0
    %1213 = vdwg.mxu0
    %s1214 = scalar_lea.vmem [#allocation2], 40
    %v1215 = vld [vmem:[%s1214] sm:$0xff]
    %v1216 = vadd.f32 %v1211, %v1215
    %v1217 = vtanh.pop %v1216
    %s1218 = scalar_lea.vmem [#allocation6], 40
    %1219 = vst.msk [vmem:[%s1218] sm:$0xff] %vm172, %v1217
    %v1220 = vld [vmem:[%s3] sm:$0xff]
    %v1221 = vld [vmem:[%s3 + $0x8] sm:$0xff]
    %v1222 = vld [vmem:[%s3 + $0x10] sm:$0xff]
    %v1223 = vld [vmem:[%s3 + $0x18] sm:$0xff]
    %v1225 = vsel %vm172, %v1217, 0
    %1227 = vmatprep.subr.mxu0 0.0
    %1228 = vmatpush1.msra.mxu0 %v1220
    %1229 = vmatprep.subr.mxu0 0.0
    %1230 = vmatpush1.msra.mxu0 %v1221
    %1231 = vmatprep.subr.mxu0 0.0
    %1232 = vmatpush1.msra.mxu0 %v1222
    %1233 = vmatprep.subr.mxu0 0.0
    %1234 = vmatpush1.msra.mxu0 %v1223
    %1235 = vmatprep.subr.mxu0 0.0
    %1236 = vmatpush1.msra.mxu0 0.0
    %1237 = vmatprep.subr.mxu0 0.0
    %1238 = vmatpush1.msra.mxu0 0.0
    %1239 = vmatprep.subr.mxu0 0.0
    %1240 = vmatpush1.msra.mxu0 0.0
    %1241 = vmatprep.subr.mxu0 0.0
    %1242 = vmatpush1.msra.mxu0 0.0
    %1243 = vmatprep.subr.mxu0 0.0
    %1244 = vmatpush1.msra.mxu0 0.0
    %1245 = vmatprep.subr.mxu0 0.0
    %1246 = vmatpush1.msra.mxu0 0.0
    %1247 = vmatprep.subr.mxu0 0.0
    %1248 = vmatpush1.msra.mxu0 0.0
    %1249 = vmatprep.subr.mxu0 0.0
    %1250 = vmatpush1.msra.mxu0 0.0
    %1251 = vmatprep.subr.mxu0 0.0
    %1252 = vmatpush1.msra.mxu0 0.0
    %1253 = vmatprep.subr.mxu0 0.0
    %1254 = vmatpush1.msra.mxu0 0.0
    %1255 = vmatprep.subr.mxu0 0.0
    %1256 = vmatpush1.msra.mxu0 0.0
    %1257 = vmatprep.subr.mxu0 0.0
    %1258 = vmatpush1.msra.mxu0 0.0
    %1259 = vmatprep.subr.mxu0 0.0
    %1260 = vmatpush1.msra.mxu0 0.0
    %1261 = vmatprep.subr.mxu0 0.0
    %1262 = vmatpush1.msra.mxu0 0.0
    %1263 = vmatprep.subr.mxu0 0.0
    %1264 = vmatpush1.msra.mxu0 0.0
    %1265 = vmatprep.subr.mxu0 0.0
    %1266 = vmatpush1.msra.mxu0 0.0
    %1267 = vmatprep.subr.mxu0 0.0
    %1268 = vmatpush1.msra.mxu0 0.0
    %1269 = vmatprep.subr.mxu0 0.0
    %1270 = vmatpush1.msra.mxu0 0.0
    %1271 = vmatprep.subr.mxu0 0.0
    %1272 = vmatpush1.msra.mxu0 0.0
    %1273 = vmatprep.subr.mxu0 0.0
    %1274 = vmatpush1.msra.mxu0 0.0
    %1275 = vmatprep.subr.mxu0 0.0
    %1276 = vmatpush1.msra.mxu0 0.0
    %1277 = vmatprep.subr.mxu0 0.0
    %1278 = vmatpush1.msra.mxu0 0.0
    %1279 = vmatprep.subr.mxu0 0.0
    %1280 = vmatpush1.msra.mxu0 0.0
    %1281 = vmatprep.subr.mxu0 0.0
    %1282 = vmatpush1.msra.mxu0 0.0
    %1283 = vmatprep.subr.mxu0 0.0
    %1284 = vmatpush1.msra.mxu0 0.0
    %1285 = vmatprep.subr.mxu0 0.0
    %1286 = vmatpush1.msra.mxu0 0.0
    %1287 = vmatprep.subr.mxu0 0.0
    %1288 = vmatpush1.msra.mxu0 0.0
    %1289 = vmatprep.subr.mxu0 0.0
    %1290 = vmatpush1.msra.mxu0 0.0
    %1291 = vmatprep.mubr.f32.mxu0 0.0
    %1292 = vmatmul.mubr.f32.gmra.mrb[0].mxu0 %v1225
    %v1293 = vpop.f32.mrb[0].mxu0
    %v1294 = vadd.f32 0.0, %v1293
    %v1295 = vpop.f32.mrb[0].mxu0
    %1296 = vdwg.mxu0
    %1298 = vrot.lane.b32.xlu0 %v1294, 32
    %v1299 = vpop.permute.xlu0 %1298
    %v1301 = vadd.f32 %v1211, %v1299
    %s1302 = scalar_lea.vmem [#allocation3], 40
    %v1303 = vld [vmem:[%s1302] sm:$0xff]
    %1305 = vrot.lane.b32.xlu0 %v1303, 32
    %v1306 = vpop.permute.xlu0 %1305
    %v1308 = vadd.f32 %v1301, %v1306
    %1310 = vrot.lane.b32.xlu0 %v1308, 96
    %v1311 = vpop.permute.xlu0 %1310
    %s1313 = scalar_lea.vmem [#allocation5], 48
    %1314 = vst.msk [vmem:[%s1313] sm:$0xff] %vm172, %v1311
    %v1315 = vld [vmem:[%s2] sm:$0xff]
    %v1316 = vld [vmem:[%s2 + $0x8] sm:$0xff]
    %v1317 = vld [vmem:[%s2 + $0x10] sm:$0xff]
    %v1318 = vld [vmem:[%s2 + $0x18] sm:$0xff]
    %v1319 = vsel %vm172, %v1311, 0
    %1321 = vmatprep.subr.mxu0 0.0
    %1322 = vmatpush1.msra.mxu0 %v1315
    %1323 = vmatprep.subr.mxu0 0.0
    %1324 = vmatpush1.msra.mxu0 %v1316
    %1325 = vmatprep.subr.mxu0 0.0
    %1326 = vmatpush1.msra.mxu0 %v1317
    %1327 = vmatprep.subr.mxu0 0.0
    %1328 = vmatpush1.msra.mxu0 %v1318
    %1329 = vmatprep.subr.mxu0 0.0
    %1330 = vmatpush1.msra.mxu0 0.0
    %1331 = vmatprep.subr.mxu0 0.0
    %1332 = vmatpush1.msra.mxu0 0.0
    %1333 = vmatprep.subr.mxu0 0.0
    %1334 = vmatpush1.msra.mxu0 0.0
    %1335 = vmatprep.subr.mxu0 0.0
    %1336 = vmatpush1.msra.mxu0 0.0
    %1337 = vmatprep.subr.mxu0 0.0
    %1338 = vmatpush1.msra.mxu0 0.0
    %1339 = vmatprep.subr.mxu0 0.0
    %1340 = vmatpush1.msra.mxu0 0.0
    %1341 = vmatprep.subr.mxu0 0.0
    %1342 = vmatpush1.msra.mxu0 0.0
    %1343 = vmatprep.subr.mxu0 0.0
    %1344 = vmatpush1.msra.mxu0 0.0
    %1345 = vmatprep.subr.mxu0 0.0
    %1346 = vmatpush1.msra.mxu0 0.0
    %1347 = vmatprep.subr.mxu0 0.0
    %1348 = vmatpush1.msra.mxu0 0.0
    %1349 = vmatprep.subr.mxu0 0.0
    %1350 = vmatpush1.msra.mxu0 0.0
    %1351 = vmatprep.subr.mxu0 0.0
    %1352 = vmatpush1.msra.mxu0 0.0
    %1353 = vmatprep.subr.mxu0 0.0
    %1354 = vmatpush1.msra.mxu0 0.0
    %1355 = vmatprep.subr.mxu0 0.0
    %1356 = vmatpush1.msra.mxu0 0.0
    %1357 = vmatprep.subr.mxu0 0.0
    %1358 = vmatpush1.msra.mxu0 0.0
    %1359 = vmatprep.subr.mxu0 0.0
    %1360 = vmatpush1.msra.mxu0 0.0
    %1361 = vmatprep.subr.mxu0 0.0
    %1362 = vmatpush1.msra.mxu0 0.0
    %1363 = vmatprep.subr.mxu0 0.0
    %1364 = vmatpush1.msra.mxu0 0.0
    %1365 = vmatprep.subr.mxu0 0.0
    %1366 = vmatpush1.msra.mxu0 0.0
    %1367 = vmatprep.subr.mxu0 0.0
    %1368 = vmatpush1.msra.mxu0 0.0
    %1369 = vmatprep.subr.mxu0 0.0
    %1370 = vmatpush1.msra.mxu0 0.0
    %1371 = vmatprep.subr.mxu0 0.0
    %1372 = vmatpush1.msra.mxu0 0.0
    %1373 = vmatprep.subr.mxu0 0.0
    %1374 = vmatpush1.msra.mxu0 0.0
    %1375 = vmatprep.subr.mxu0 0.0
    %1376 = vmatpush1.msra.mxu0 0.0
    %1377 = vmatprep.subr.mxu0 0.0
    %1378 = vmatpush1.msra.mxu0 0.0
    %1379 = vmatprep.subr.mxu0 0.0
    %1380 = vmatpush1.msra.mxu0 0.0
    %1381 = vmatprep.subr.mxu0 0.0
    %1382 = vmatpush1.msra.mxu0 0.0
    %1383 = vmatprep.subr.mxu0 0.0
    %1384 = vmatpush1.msra.mxu0 0.0
    %1385 = vmatprep.mubr.f32.mxu0 0.0
    %1386 = vmatmul.mubr.f32.gmra.mrb[0].mxu0 %v1319
    %v1387 = vpop.f32.mrb[0].mxu0
    %v1388 = vadd.f32 0.0, %v1387
    %v1389 = vpop.f32.mrb[0].mxu0
    %1390 = vdwg.mxu0
    %s1391 = scalar_lea.vmem [#allocation2], 48
    %v1392 = vld [vmem:[%s1391] sm:$0xff]
    %v1393 = vadd.f32 %v1388, %v1392
    %v1394 = vtanh.pop %v1393
    %s1395 = scalar_lea.vmem [#allocation6], 48
    %1396 = vst.msk [vmem:[%s1395] sm:$0xff] %vm172, %v1394
    %v1397 = vld [vmem:[%s3] sm:$0xff]
    %v1398 = vld [vmem:[%s3 + $0x8] sm:$0xff]
    %v1399 = vld [vmem:[%s3 + $0x10] sm:$0xff]
    %v1400 = vld [vmem:[%s3 + $0x18] sm:$0xff]
    %v1402 = vsel %vm172, %v1394, 0
    %1404 = vmatprep.subr.mxu0 0.0
    %1405 = vmatpush1.msra.mxu0 %v1397
    %1406 = vmatprep.subr.mxu0 0.0
    %1407 = vmatpush1.msra.mxu0 %v1398
    %1408 = vmatprep.subr.mxu0 0.0
    %1409 = vmatpush1.msra.mxu0 %v1399
    %1410 = vmatprep.subr.mxu0 0.0
    %1411 = vmatpush1.msra.mxu0 %v1400
    %1412 = vmatprep.subr.mxu0 0.0
    %1413 = vmatpush1.msra.mxu0 0.0
    %1414 = vmatprep.subr.mxu0 0.0
    %1415 = vmatpush1.msra.mxu0 0.0
    %1416 = vmatprep.subr.mxu0 0.0
    %1417 = vmatpush1.msra.mxu0 0.0
    %1418 = vmatprep.subr.mxu0 0.0
    %1419 = vmatpush1.msra.mxu0 0.0
    %1420 = vmatprep.subr.mxu0 0.0
    %1421 = vmatpush1.msra.mxu0 0.0
    %1422 = vmatprep.subr.mxu0 0.0
    %1423 = vmatpush1.msra.mxu0 0.0
    %1424 = vmatprep.subr.mxu0 0.0
    %1425 = vmatpush1.msra.mxu0 0.0
    %1426 = vmatprep.subr.mxu0 0.0
    %1427 = vmatpush1.msra.mxu0 0.0
    %1428 = vmatprep.subr.mxu0 0.0
    %1429 = vmatpush1.msra.mxu0 0.0
    %1430 = vmatprep.subr.mxu0 0.0
    %1431 = vmatpush1.msra.mxu0 0.0
    %1432 = vmatprep.subr.mxu0 0.0
    %1433 = vmatpush1.msra.mxu0 0.0
    %1434 = vmatprep.subr.mxu0 0.0
    %1435 = vmatpush1.msra.mxu0 0.0
    %1436 = vmatprep.subr.mxu0 0.0
    %1437 = vmatpush1.msra.mxu0 0.0
    %1438 = vmatprep.subr.mxu0 0.0
    %1439 = vmatpush1.msra.mxu0 0.0
    %1440 = vmatprep.subr.mxu0 0.0
    %1441 = vmatpush1.msra.mxu0 0.0
    %1442 = vmatprep.subr.mxu0 0.0
    %1443 = vmatpush1.msra.mxu0 0.0
    %1444 = vmatprep.subr.mxu0 0.0
    %1445 = vmatpush1.msra.mxu0 0.0
    %1446 = vmatprep.subr.mxu0 0.0
    %1447 = vmatpush1.msra.mxu0 0.0
    %1448 = vmatprep.subr.mxu0 0.0
    %1449 = vmatpush1.msra.mxu0 0.0
    %1450 = vmatprep.subr.mxu0 0.0
    %1451 = vmatpush1.msra.mxu0 0.0
    %1452 = vmatprep.subr.mxu0 0.0
    %1453 = vmatpush1.msra.mxu0 0.0
    %1454 = vmatprep.subr.mxu0 0.0
    %1455 = vmatpush1.msra.mxu0 0.0
    %1456 = vmatprep.subr.mxu0 0.0
    %1457 = vmatpush1.msra.mxu0 0.0
    %1458 = vmatprep.subr.mxu0 0.0
    %1459 = vmatpush1.msra.mxu0 0.0
    %1460 = vmatprep.subr.mxu0 0.0
    %1461 = vmatpush1.msra.mxu0 0.0
    %1462 = vmatprep.subr.mxu0 0.0
    %1463 = vmatpush1.msra.mxu0 0.0
    %1464 = vmatprep.subr.mxu0 0.0
    %1465 = vmatpush1.msra.mxu0 0.0
    %1466 = vmatprep.subr.mxu0 0.0
    %1467 = vmatpush1.msra.mxu0 0.0
    %1468 = vmatprep.mubr.f32.mxu0 0.0
    %1469 = vmatmul.mubr.f32.gmra.mrb[0].mxu0 %v1402
    %v1470 = vpop.f32.mrb[0].mxu0
    %v1471 = vadd.f32 0.0, %v1470
    %v1472 = vpop.f32.mrb[0].mxu0
    %1473 = vdwg.mxu0
    %1475 = vrot.lane.b32.xlu0 %v1471, 32
    %v1476 = vpop.permute.xlu0 %1475
    %v1478 = vadd.f32 %v1388, %v1476
    %s1479 = scalar_lea.vmem [#allocation3], 48
    %v1480 = vld [vmem:[%s1479] sm:$0xff]
    %1482 = vrot.lane.b32.xlu0 %v1480, 32
    %v1483 = vpop.permute.xlu0 %1482
    %v1485 = vadd.f32 %v1478, %v1483
    %1487 = vrot.lane.b32.xlu0 %v1485, 96
    %v1488 = vpop.permute.xlu0 %1487
    %s1490 = scalar_lea.vmem [#allocation5], 56
    %1491 = vst.msk [vmem:[%s1490] sm:$0xff] %vm172, %v1488
    %v1492 = vld [vmem:[%s2] sm:$0xff]
    %v1493 = vld [vmem:[%s2 + $0x8] sm:$0xff]
    %v1494 = vld [vmem:[%s2 + $0x10] sm:$0xff]
    %v1495 = vld [vmem:[%s2 + $0x18] sm:$0xff]
    %v1496 = vsel %vm172, %v1488, 0
    %1498 = vmatprep.subr.mxu0 0.0
    %1499 = vmatpush1.msra.mxu0 %v1492
    %1500 = vmatprep.subr.mxu0 0.0
    %1501 = vmatpush1.msra.mxu0 %v1493
    %1502 = vmatprep.subr.mxu0 0.0
    %1503 = vmatpush1.msra.mxu0 %v1494
    %1504 = vmatprep.subr.mxu0 0.0
    %1505 = vmatpush1.msra.mxu0 %v1495
    %1506 = vmatprep.subr.mxu0 0.0
    %1507 = vmatpush1.msra.mxu0 0.0
    %1508 = vmatprep.subr.mxu0 0.0
    %1509 = vmatpush1.msra.mxu0 0.0
    %1510 = vmatprep.subr.mxu0 0.0
    %1511 = vmatpush1.msra.mxu0 0.0
    %1512 = vmatprep.subr.mxu0 0.0
    %1513 = vmatpush1.msra.mxu0 0.0
    %1514 = vmatprep.subr.mxu0 0.0
    %1515 = vmatpush1.msra.mxu0 0.0
    %1516 = vmatprep.subr.mxu0 0.0
    %1517 = vmatpush1.msra.mxu0 0.0
    %1518 = vmatprep.subr.mxu0 0.0
    %1519 = vmatpush1.msra.mxu0 0.0
    %1520 = vmatprep.subr.mxu0 0.0
    %1521 = vmatpush1.msra.mxu0 0.0
    %1522 = vmatprep.subr.mxu0 0.0
    %1523 = vmatpush1.msra.mxu0 0.0
    %1524 = vmatprep.subr.mxu0 0.0
    %1525 = vmatpush1.msra.mxu0 0.0
    %1526 = vmatprep.subr.mxu0 0.0
    %1527 = vmatpush1.msra.mxu0 0.0
    %1528 = vmatprep.subr.mxu0 0.0
    %1529 = vmatpush1.msra.mxu0 0.0
    %1530 = vmatprep.subr.mxu0 0.0
    %1531 = vmatpush1.msra.mxu0 0.0
    %1532 = vmatprep.subr.mxu0 0.0
    %1533 = vmatpush1.msra.mxu0 0.0
    %1534 = vmatprep.subr.mxu0 0.0
    %1535 = vmatpush1.msra.mxu0 0.0
    %1536 = vmatprep.subr.mxu0 0.0
    %1537 = vmatpush1.msra.mxu0 0.0
    %1538 = vmatprep.subr.mxu0 0.0
    %1539 = vmatpush1.msra.mxu0 0.0
    %1540 = vmatprep.subr.mxu0 0.0
    %1541 = vmatpush1.msra.mxu0 0.0
    %1542 = vmatprep.subr.mxu0 0.0
    %1543 = vmatpush1.msra.mxu0 0.0
    %1544 = vmatprep.subr.mxu0 0.0
    %1545 = vmatpush1.msra.mxu0 0.0
    %1546 = vmatprep.subr.mxu0 0.0
    %1547 = vmatpush1.msra.mxu0 0.0
    %1548 = vmatprep.subr.mxu0 0.0
    %1549 = vmatpush1.msra.mxu0 0.0
    %1550 = vmatprep.subr.mxu0 0.0
    %1551 = vmatpush1.msra.mxu0 0.0
    %1552 = vmatprep.subr.mxu0 0.0
    %1553 = vmatpush1.msra.mxu0 0.0
    %1554 = vmatprep.subr.mxu0 0.0
    %1555 = vmatpush1.msra.mxu0 0.0
    %1556 = vmatprep.subr.mxu0 0.0
    %1557 = vmatpush1.msra.mxu0 0.0
    %1558 = vmatprep.subr.mxu0 0.0
    %1559 = vmatpush1.msra.mxu0 0.0
    %1560 = vmatprep.subr.mxu0 0.0
    %1561 = vmatpush1.msra.mxu0 0.0
    %1562 = vmatprep.mubr.f32.mxu0 0.0
    %1563 = vmatmul.mubr.f32.gmra.mrb[0].mxu0 %v1496
    %v1564 = vpop.f32.mrb[0].mxu0
    %v1565 = vadd.f32 0.0, %v1564
    %v1566 = vpop.f32.mrb[0].mxu0
    %1567 = vdwg.mxu0
    %s1568 = scalar_lea.vmem [#allocation2], 56
    %v1569 = vld [vmem:[%s1568] sm:$0xff]
    %v1570 = vadd.f32 %v1565, %v1569
    %v1571 = vtanh.pop %v1570
    %s1572 = scalar_lea.vmem [#allocation6], 56
    %1573 = vst.msk [vmem:[%s1572] sm:$0xff] %vm172, %v1571
    %v1574 = vld [vmem:[%s3] sm:$0xff]
    %v1575 = vld [vmem:[%s3 + $0x8] sm:$0xff]
    %v1576 = vld [vmem:[%s3 + $0x10] sm:$0xff]
    %v1577 = vld [vmem:[%s3 + $0x18] sm:$0xff]
    %v1579 = vsel %vm172, %v1571, 0
    %1581 = vmatprep.subr.mxu0 0.0
    %1582 = vmatpush1.msra.mxu0 %v1574
    %1583 = vmatprep.subr.mxu0 0.0
    %1584 = vmatpush1.msra.mxu0 %v1575
    %1585 = vmatprep.subr.mxu0 0.0
    %1586 = vmatpush1.msra.mxu0 %v1576
    %1587 = vmatprep.subr.mxu0 0.0
    %1588 = vmatpush1.msra.mxu0 %v1577
    %1589 = vmatprep.subr.mxu0 0.0
    %1590 = vmatpush1.msra.mxu0 0.0
    %1591 = vmatprep.subr.mxu0 0.0
    %1592 = vmatpush1.msra.mxu0 0.0
    %1593 = vmatprep.subr.mxu0 0.0
    %1594 = vmatpush1.msra.mxu0 0.0
    %1595 = vmatprep.subr.mxu0 0.0
    %1596 = vmatpush1.msra.mxu0 0.0
    %1597 = vmatprep.subr.mxu0 0.0
    %1598 = vmatpush1.msra.mxu0 0.0
    %1599 = vmatprep.subr.mxu0 0.0
    %1600 = vmatpush1.msra.mxu0 0.0
    %1601 = vmatprep.subr.mxu0 0.0
    %1602 = vmatpush1.msra.mxu0 0.0
    %1603 = vmatprep.subr.mxu0 0.0
    %1604 = vmatpush1.msra.mxu0 0.0
    %1605 = vmatprep.subr.mxu0 0.0
    %1606 = vmatpush1.msra.mxu0 0.0
    %1607 = vmatprep.subr.mxu0 0.0
    %1608 = vmatpush1.msra.mxu0 0.0
    %1609 = vmatprep.subr.mxu0 0.0
    %1610 = vmatpush1.msra.mxu0 0.0
    %1611 = vmatprep.subr.mxu0 0.0
    %1612 = vmatpush1.msra.mxu0 0.0
    %1613 = vmatprep.subr.mxu0 0.0
    %1614 = vmatpush1.msra.mxu0 0.0
    %1615 = vmatprep.subr.mxu0 0.0
    %1616 = vmatpush1.msra.mxu0 0.0
    %1617 = vmatprep.subr.mxu0 0.0
    %1618 = vmatpush1.msra.mxu0 0.0
    %1619 = vmatprep.subr.mxu0 0.0
    %1620 = vmatpush1.msra.mxu0 0.0
    %1621 = vmatprep.subr.mxu0 0.0
    %1622 = vmatpush1.msra.mxu0 0.0
    %1623 = vmatprep.subr.mxu0 0.0
    %1624 = vmatpush1.msra.mxu0 0.0
    %1625 = vmatprep.subr.mxu0 0.0
    %1626 = vmatpush1.msra.mxu0 0.0
    %1627 = vmatprep.subr.mxu0 0.0
    %1628 = vmatpush1.msra.mxu0 0.0
    %1629 = vmatprep.subr.mxu0 0.0
    %1630 = vmatpush1.msra.mxu0 0.0
    %1631 = vmatprep.subr.mxu0 0.0
    %1632 = vmatpush1.msra.mxu0 0.0
    %1633 = vmatprep.subr.mxu0 0.0
    %1634 = vmatpush1.msra.mxu0 0.0
    %1635 = vmatprep.subr.mxu0 0.0
    %1636 = vmatpush1.msra.mxu0 0.0
    %1637 = vmatprep.subr.mxu0 0.0
    %1638 = vmatpush1.msra.mxu0 0.0
    %1639 = vmatprep.subr.mxu0 0.0
    %1640 = vmatpush1.msra.mxu0 0.0
    %1641 = vmatprep.subr.mxu0 0.0
    %1642 = vmatpush1.msra.mxu0 0.0
    %1643 = vmatprep.subr.mxu0 0.0
    %1644 = vmatpush1.msra.mxu0 0.0
    %1645 = vmatprep.mubr.f32.mxu0 0.0
    %1646 = vmatmul.mubr.f32.gmra.mrb[0].mxu0 %v1579
    %v1647 = vpop.f32.mrb[0].mxu0
    %v1648 = vadd.f32 0.0, %v1647
    %v1649 = vpop.f32.mrb[0].mxu0
    %1650 = vdwg.mxu0
    %1652 = vrot.lane.b32.xlu0 %v1648, 32
    %v1653 = vpop.permute.xlu0 %1652
    %v1655 = vadd.f32 %v1565, %v1653
    %s1656 = scalar_lea.vmem [#allocation3], 56
    %v1657 = vld [vmem:[%s1656] sm:$0xff]
    %1659 = vrot.lane.b32.xlu0 %v1657, 32
    %v1660 = vpop.permute.xlu0 %1659
    %v1662 = vadd.f32 %v1655, %v1660
    %1664 = vrot.lane.b32.xlu0 %v1662, 96
    %v1665 = vpop.permute.xlu0 %1664
    %1667 = vst.msk [vmem:[#allocation7] sm:$0xff] %vm172, %v1665
    %v1668 = vld [vmem:[#allocation5] sm:$0xff]
    %v1669 = vld [vmem:[#allocation5 + $0x8] sm:$0xff]
    %v1670 = vld [vmem:[#allocation5 + $0x10] sm:$0xff]
    %v1671 = vld [vmem:[#allocation5 + $0x18] sm:$0xff]
    %v1672 = vld [vmem:[#allocation5 + $0x20] sm:$0xff]
    %v1673 = vld [vmem:[#allocation5 + $0x28] sm:$0xff]
    %v1674 = vld [vmem:[#allocation5 + $0x30] sm:$0xff]
    %v1675 = vld [vmem:[#allocation5 + $0x38] sm:$0xff]
    %v1676 = vld [vmem:[#allocation6] sm:$0xff]
    %v1677 = vld [vmem:[#allocation6 + $0x8] sm:$0xff]
    %v1678 = vld [vmem:[#allocation6 + $0x10] sm:$0xff]
    %v1679 = vld [vmem:[#allocation6 + $0x18] sm:$0xff]
    %v1680 = vld [vmem:[#allocation6 + $0x20] sm:$0xff]
    %v1681 = vld [vmem:[#allocation6 + $0x28] sm:$0xff]
    %v1682 = vld [vmem:[#allocation6 + $0x30] sm:$0xff]
    %v1683 = vld [vmem:[#allocation6 + $0x38] sm:$0xff]
    %v1684 = vld [vmem:[%s5] sm:$0xff]
    %v1685 = vld [vmem:[%s5 + $0x8] sm:$0xff]
    %v1686 = vld [vmem:[%s5 + $0x10] sm:$0xff]
    %v1687 = vld [vmem:[%s5 + $0x18] sm:$0xff]
    %v1688 = vld [vmem:[%s6] sm:$0xff]
    %v1689 = vld [vmem:[%s6 + $0x8] sm:$0xff]
    %v1690 = vld [vmem:[%s6 + $0x10] sm:$0xff]
    %v1691 = vld [vmem:[%s6 + $0x18] sm:$0xff]
    %v1693 = vsel %vm172, %v1676, 0
    %v1696 = vsel %vm172, %v1677, 0
    %v1699 = vsel %vm172, %v1678, 0
    %v1702 = vsel %vm172, %v1679, 0
    %v1705 = vsel %vm172, %v1680, 0
    %v1708 = vsel %vm172, %v1681, 0
    %v1711 = vsel %vm172, %v1682, 0
    %v1714 = vsel %vm172, %v1683, 0
    %1716 = vmatprep.subr.mxu0 0.0
    %1717 = vmatpush1.msra.mxu0 %v1688
    %1718 = vmatprep.subr.mxu0 0.0
    %1719 = vmatpush1.msra.mxu0 %v1689
    %1720 = vmatprep.subr.mxu0 0.0
    %1721 = vmatpush1.msra.mxu0 %v1690
    %1722 = vmatprep.subr.mxu0 0.0
    %1723 = vmatpush1.msra.mxu0 %v1691
    %1724 = vmatprep.subr.mxu0 0.0
    %1725 = vmatpush1.msra.mxu0 0.0
    %1726 = vmatprep.subr.mxu0 0.0
    %1727 = vmatpush1.msra.mxu0 0.0
    %1728 = vmatprep.subr.mxu0 0.0
    %1729 = vmatpush1.msra.mxu0 0.0
    %1730 = vmatprep.subr.mxu0 0.0
    %1731 = vmatpush1.msra.mxu0 0.0
    %1732 = vmatprep.subr.mxu0 0.0
    %1733 = vmatpush1.msra.mxu0 0.0
    %1734 = vmatprep.subr.mxu0 0.0
    %1735 = vmatpush1.msra.mxu0 0.0
    %1736 = vmatprep.subr.mxu0 0.0
    %1737 = vmatpush1.msra.mxu0 0.0
    %1738 = vmatprep.subr.mxu0 0.0
    %1739 = vmatpush1.msra.mxu0 0.0
    %1740 = vmatprep.subr.mxu0 0.0
    %1741 = vmatpush1.msra.mxu0 0.0
    %1742 = vmatprep.subr.mxu0 0.0
    %1743 = vmatpush1.msra.mxu0 0.0
    %1744 = vmatprep.subr.mxu0 0.0
    %1745 = vmatpush1.msra.mxu0 0.0
    %1746 = vmatprep.subr.mxu0 0.0
    %1747 = vmatpush1.msra.mxu0 0.0
    %1748 = vmatprep.subr.mxu0 0.0
    %1749 = vmatpush1.msra.mxu0 0.0
    %1750 = vmatprep.subr.mxu0 0.0
    %1751 = vmatpush1.msra.mxu0 0.0
    %1752 = vmatprep.subr.mxu0 0.0
    %1753 = vmatpush1.msra.mxu0 0.0
    %1754 = vmatprep.subr.mxu0 0.0
    %1755 = vmatpush1.msra.mxu0 0.0
    %1756 = vmatprep.subr.mxu0 0.0
    %1757 = vmatpush1.msra.mxu0 0.0
    %1758 = vmatprep.subr.mxu0 0.0
    %1759 = vmatpush1.msra.mxu0 0.0
    %1760 = vmatprep.subr.mxu0 0.0
    %1761 = vmatpush1.msra.mxu0 0.0
    %1762 = vmatprep.subr.mxu0 0.0
    %1763 = vmatpush1.msra.mxu0 0.0
    %1764 = vmatprep.subr.mxu0 0.0
    %1765 = vmatpush1.msra.mxu0 0.0
    %1766 = vmatprep.subr.mxu0 0.0
    %1767 = vmatpush1.msra.mxu0 0.0
    %1768 = vmatprep.subr.mxu0 0.0
    %1769 = vmatpush1.msra.mxu0 0.0
    %1770 = vmatprep.subr.mxu0 0.0
    %1771 = vmatpush1.msra.mxu0 0.0
    %1772 = vmatprep.subr.mxu0 0.0
    %1773 = vmatpush1.msra.mxu0 0.0
    %1774 = vmatprep.subr.mxu0 0.0
    %1775 = vmatpush1.msra.mxu0 0.0
    %1776 = vmatprep.subr.mxu0 0.0
    %1777 = vmatpush1.msra.mxu0 0.0
    %1778 = vmatprep.subr.mxu0 0.0
    %1779 = vmatpush1.msra.mxu0 0.0
    %1780 = vmatprep.mubr.f32.mxu0 0.0
    %1781 = vmatmul.mubr.f32.gmra.mrb[0].mxu0 %v1693
    %v1782 = vpop.f32.mrb[0].mxu0
    %v1783 = vadd.f32 0.0, %v1782
    %v1784 = vpop.f32.mrb[0].mxu0
    %1785 = vmatprep.mubr.f32.mxu0 0.0
    %1786 = vmatmul.mubr.f32.gmra.mrb[0].mxu0 %v1696
    %v1787 = vpop.f32.mrb[0].mxu0
    %v1788 = vadd.f32 0.0, %v1787
    %v1789 = vpop.f32.mrb[0].mxu0
    %1790 = vmatprep.mubr.f32.mxu0 0.0
    %1791 = vmatmul.mubr.f32.gmra.mrb[0].mxu0 %v1699
    %v1792 = vpop.f32.mrb[0].mxu0
    %v1793 = vadd.f32 0.0, %v1792
    %v1794 = vpop.f32.mrb[0].mxu0
    %1795 = vmatprep.mubr.f32.mxu0 0.0
    %1796 = vmatmul.mubr.f32.gmra.mrb[0].mxu0 %v1702
    %v1797 = vpop.f32.mrb[0].mxu0
    %v1798 = vadd.f32 0.0, %v1797
    %v1799 = vpop.f32.mrb[0].mxu0
    %1800 = vmatprep.mubr.f32.mxu0 0.0
    %1801 = vmatmul.mubr.f32.gmra.mrb[0].mxu0 %v1705
    %v1802 = vpop.f32.mrb[0].mxu0
    %v1803 = vadd.f32 0.0, %v1802
    %v1804 = vpop.f32.mrb[0].mxu0
    %1805 = vmatprep.mubr.f32.mxu0 0.0
    %1806 = vmatmul.mubr.f32.gmra.mrb[0].mxu0 %v1708
    %v1807 = vpop.f32.mrb[0].mxu0
    %v1808 = vadd.f32 0.0, %v1807
    %v1809 = vpop.f32.mrb[0].mxu0
    %1810 = vmatprep.mubr.f32.mxu0 0.0
    %1811 = vmatmul.mubr.f32.gmra.mrb[0].mxu0 %v1711
    %v1812 = vpop.f32.mrb[0].mxu0
    %v1813 = vadd.f32 0.0, %v1812
    %v1814 = vpop.f32.mrb[0].mxu0
    %1815 = vmatprep.mubr.f32.mxu0 0.0
    %1816 = vmatmul.mubr.f32.gmra.mrb[0].mxu0 %v1714
    %v1817 = vpop.f32.mrb[0].mxu0
    %v1818 = vadd.f32 0.0, %v1817
    %v1819 = vpop.f32.mrb[0].mxu0
    %1820 = vdwg.mxu0
    %v1822 = vsel %vm172, %v1668, 0
    %v1825 = vsel %vm172, %v1669, 0
    %v1828 = vsel %vm172, %v1670, 0
    %v1831 = vsel %vm172, %v1671, 0
    %v1834 = vsel %vm172, %v1672, 0
    %v1837 = vsel %vm172, %v1673, 0
    %v1840 = vsel %vm172, %v1674, 0
    %v1843 = vsel %vm172, %v1675, 0
    %1845 = vmatprep.subr.mxu0 0.0
    %1846 = vmatpush1.msra.mxu0 %v1684
    %1847 = vmatprep.subr.mxu0 0.0
    %1848 = vmatpush1.msra.mxu0 %v1685
    %1849 = vmatprep.subr.mxu0 0.0
    %1850 = vmatpush1.msra.mxu0 %v1686
    %1851 = vmatprep.subr.mxu0 0.0
    %1852 = vmatpush1.msra.mxu0 %v1687
    %1853 = vmatprep.subr.mxu0 0.0
    %1854 = vmatpush1.msra.mxu0 0.0
    %1855 = vmatprep.subr.mxu0 0.0
    %1856 = vmatpush1.msra.mxu0 0.0
    %1857 = vmatprep.subr.mxu0 0.0
    %1858 = vmatpush1.msra.mxu0 0.0
    %1859 = vmatprep.subr.mxu0 0.0
    %1860 = vmatpush1.msra.mxu0 0.0
    %1861 = vmatprep.subr.mxu0 0.0
    %1862 = vmatpush1.msra.mxu0 0.0
    %1863 = vmatprep.subr.mxu0 0.0
    %1864 = vmatpush1.msra.mxu0 0.0
    %1865 = vmatprep.subr.mxu0 0.0
    %1866 = vmatpush1.msra.mxu0 0.0
    %1867 = vmatprep.subr.mxu0 0.0
    %1868 = vmatpush1.msra.mxu0 0.0
    %1869 = vmatprep.subr.mxu0 0.0
    %1870 = vmatpush1.msra.mxu0 0.0
    %1871 = vmatprep.subr.mxu0 0.0
    %1872 = vmatpush1.msra.mxu0 0.0
    %1873 = vmatprep.subr.mxu0 0.0
    %1874 = vmatpush1.msra.mxu0 0.0
    %1875 = vmatprep.subr.mxu0 0.0
    %1876 = vmatpush1.msra.mxu0 0.0
    %1877 = vmatprep.subr.mxu0 0.0
    %1878 = vmatpush1.msra.mxu0 0.0
    %1879 = vmatprep.subr.mxu0 0.0
    %1880 = vmatpush1.msra.mxu0 0.0
    %1881 = vmatprep.subr.mxu0 0.0
    %1882 = vmatpush1.msra.mxu0 0.0
    %1883 = vmatprep.subr.mxu0 0.0
    %1884 = vmatpush1.msra.mxu0 0.0
    %1885 = vmatprep.subr.mxu0 0.0
    %1886 = vmatpush1.msra.mxu0 0.0
    %1887 = vmatprep.subr.mxu0 0.0
    %1888 = vmatpush1.msra.mxu0 0.0
    %1889 = vmatprep.subr.mxu0 0.0
    %1890 = vmatpush1.msra.mxu0 0.0
    %1891 = vmatprep.subr.mxu0 0.0
    %1892 = vmatpush1.msra.mxu0 0.0
    %1893 = vmatprep.subr.mxu0 0.0
    %1894 = vmatpush1.msra.mxu0 0.0
    %1895 = vmatprep.subr.mxu0 0.0
    %1896 = vmatpush1.msra.mxu0 0.0
    %1897 = vmatprep.subr.mxu0 0.0
    %1898 = vmatpush1.msra.mxu0 0.0
    %1899 = vmatprep.subr.mxu0 0.0
    %1900 = vmatpush1.msra.mxu0 0.0
    %1901 = vmatprep.subr.mxu0 0.0
    %1902 = vmatpush1.msra.mxu0 0.0
    %1903 = vmatprep.subr.mxu0 0.0
    %1904 = vmatpush1.msra.mxu0 0.0
    %1905 = vmatprep.subr.mxu0 0.0
    %1906 = vmatpush1.msra.mxu0 0.0
    %1907 = vmatprep.subr.mxu0 0.0
    %1908 = vmatpush1.msra.mxu0 0.0
    %1909 = vmatprep.mubr.f32.mxu0 0.0
    %1910 = vmatmul.mubr.f32.gmra.mrb[0].mxu0 %v1822
    %v1911 = vpop.f32.mrb[0].mxu0
    %v1912 = vadd.f32 %v1783, %v1911
    %v1913 = vpop.f32.mrb[0].mxu0
    %1914 = vmatprep.mubr.f32.mxu0 0.0
    %1915 = vmatmul.mubr.f32.gmra.mrb[0].mxu0 %v1825
    %v1916 = vpop.f32.mrb[0].mxu0
    %v1917 = vadd.f32 %v1788, %v1916
    %v1918 = vpop.f32.mrb[0].mxu0
    %1919 = vmatprep.mubr.f32.mxu0 0.0
    %1920 = vmatmul.mubr.f32.gmra.mrb[0].mxu0 %v1828
    %v1921 = vpop.f32.mrb[0].mxu0
    %v1922 = vadd.f32 %v1793, %v1921
    %v1923 = vpop.f32.mrb[0].mxu0
    %1924 = vmatprep.mubr.f32.mxu0 0.0
    %1925 = vmatmul.mubr.f32.gmra.mrb[0].mxu0 %v1831
    %v1926 = vpop.f32.mrb[0].mxu0
    %v1927 = vadd.f32 %v1798, %v1926
    %v1928 = vpop.f32.mrb[0].mxu0
    %1929 = vmatprep.mubr.f32.mxu0 0.0
    %1930 = vmatmul.mubr.f32.gmra.mrb[0].mxu0 %v1834
    %v1931 = vpop.f32.mrb[0].mxu0
    %v1932 = vadd.f32 %v1803, %v1931
    %v1933 = vpop.f32.mrb[0].mxu0
    %1934 = vmatprep.mubr.f32.mxu0 0.0
    %1935 = vmatmul.mubr.f32.gmra.mrb[0].mxu0 %v1837
    %v1936 = vpop.f32.mrb[0].mxu0
    %v1937 = vadd.f32 %v1808, %v1936
    %v1938 = vpop.f32.mrb[0].mxu0
    %1939 = vmatprep.mubr.f32.mxu0 0.0
    %1940 = vmatmul.mubr.f32.gmra.mrb[0].mxu0 %v1840
    %v1941 = vpop.f32.mrb[0].mxu0
    %v1942 = vadd.f32 %v1813, %v1941
    %v1943 = vpop.f32.mrb[0].mxu0
    %1944 = vmatprep.mubr.f32.mxu0 0.0
    %1945 = vmatmul.mubr.f32.gmra.mrb[0].mxu0 %v1843
    %v1946 = vpop.f32.mrb[0].mxu0
    %v1947 = vadd.f32 %v1818, %v1946
    %v1948 = vpop.f32.mrb[0].mxu0
    %1949 = vdwg.mxu0
    %v1950 = vld [vmem:[#allocation4] sm:$0xff]
    %v1951 = vld [vmem:[#allocation4 + $0x8] sm:$0xff]
    %v1952 = vld [vmem:[#allocation4 + $0x10] sm:$0xff]
    %v1953 = vld [vmem:[#allocation4 + $0x18] sm:$0xff]
    %v1954 = vld [vmem:[#allocation4 + $0x20] sm:$0xff]
    %v1955 = vld [vmem:[#allocation4 + $0x28] sm:$0xff]
    %v1956 = vld [vmem:[#allocation4 + $0x30] sm:$0xff]
    %v1957 = vld [vmem:[#allocation4 + $0x38] sm:$0xff]
    %v1958 = vadd.f32 %v1912, %v1950
    %v1959 = vadd.f32 %v1917, %v1951
    %v1960 = vadd.f32 %v1922, %v1952
    %v1961 = vadd.f32 %v1927, %v1953
    %v1962 = vadd.f32 %v1932, %v1954
    %v1963 = vadd.f32 %v1937, %v1955
    %v1964 = vadd.f32 %v1942, %v1956
    %v1965 = vadd.f32 %v1947, %v1957
    %1966 = vst.msk [vmem:[%s7] sm:$0xff] %vm38, %v1958
    %1967 = vst.msk [vmem:[%s7 + $0x8] sm:$0xff] %vm38, %v1959
    %1968 = vst.msk [vmem:[%s7 + $0x10] sm:$0xff] %vm38, %v1960
    %1969 = vst.msk [vmem:[%s7 + $0x18] sm:$0xff] %vm38, %v1961
    %1970 = vst.msk [vmem:[%s7 + $0x20] sm:$0xff] %vm38, %v1962
    %1971 = vst.msk [vmem:[%s7 + $0x28] sm:$0xff] %vm38, %v1963
    %1972 = vst.msk [vmem:[%s7 + $0x30] sm:$0xff] %vm38, %v1964
    %1973 = vst.msk [vmem:[%s7 + $0x38] sm:$0xff] %vm38, %v1965
    // Predicated region
    $region30: #{tpu_custom_call.1} parent=1 // pred_check
      _
    $region31: #{tpu_custom_call.1} parent=1 // pred_check_branch
      %1975 = sbr.rel (0) target = $region33
    $region32: #{tpu_custom_call.1} parent=1 // pred_region
      _
    $region33: #{tpu_custom_call.1} parent=1 // pred_fallthru
      _
    // Predicated region
    $region34: #{tpu_custom_call.1} parent=1 // pred_check
      _
    $region35: #{tpu_custom_call.1} parent=1 // pred_check_branch
      %1977 = sbr.rel (0) target = $region37
    $region36: #{tpu_custom_call.1} parent=1 // pred_region
      %s1979 = ssub.s32 128, 128
      %1980 = vsyncadd [#allocation8], %s1979
      %s1982 = sshll.u32 [#allocation7], 4
      %s1983 = int_to_ptr.vmem [resolvable:$true] %s1982
      %1985 = dma.vmem_to_hbm [thread:$0]  %s1983, 128, %s8, [#allocation8]
    $region37: #{tpu_custom_call.1} parent=1 // pred_fallthru
      _
    // Predicated region
    $region38: #{tpu_custom_call.1} parent=1 // pred_check
      _
    $region39: #{tpu_custom_call.1} parent=1 // pred_check_branch
      %1987 = sbr.rel (0) target = $region41
    $region40: #{tpu_custom_call.1} parent=1 // pred_region
      _
    $region41: #{tpu_custom_call.1} parent=1 // pred_fallthru
      _
    // Predicated region
    $region42: #{tpu_custom_call.1} parent=1 // pred_check
      _
    $region43: #{tpu_custom_call.1} parent=1 // pred_check_branch
      %1989 = sbr.rel (0) target = $region45
    $region44: #{tpu_custom_call.1} parent=1 // pred_region
      %1990 = dma.done [#allocation8], 128
    $region45: #{tpu_custom_call.1} parent=1 // pred_fallthru
      _
    %1991 = vsyncpa [#allocation8], 1

</llo_original>
